<compile_context>
chip_gen: v7x
topology: tpu7x:2x2x1
jax: 0.10.0
libtpu: 0.0.40
codegen_flags: <defaults>
</compile_context>

<pallas_src>
import jax
import jax.numpy as jnp
import numpy as np
from jax import lax
from jax.experimental import pallas as pl
from jax.experimental.pallas import tpu as pltpu

KSIZE = 7
PAD = KSIZE // 2


def _round_up(v, m):
    return -(-v // m) * m


def _make_kernel(NB, C, H, W, CHUNK, HWpad, DATA_OFF):
    HW = H * W
    n_chunks = C // CHUNK
    inv_c = np.float32(1.0 / C)
    # tap (c, ky, kx) of the flat conv starts at base_off + ky*W + kx
    base_off = DATA_OFF - (PAD * W + PAD)

    def kernel(w_ref, mask_ref, x_ref, o_ref, padf_ref):
        # w_ref    : SMEM (2*7*7,) f32     flat conv weights, layout [c, ky, kx]
        # mask_ref : VMEM (7, HW) f32      column-validity masks, one per kx
        # x_ref    : VMEM (NB, C, HW)      lane-dense input block
        # o_ref    : VMEM (1, NB, HW)      lane-dense output block
        # padf_ref : VMEM (2, NB, HWpad) f32  zero-padded flat avg / max maps

        # ---- zero the padded scratch with one bulk store (megacore safe) ----
        padf_ref[...] = jnp.zeros((2, NB, HWpad), jnp.float32)

        # ---- per image: channel mean / max with 2-D chunk accumulators ----
        for nb in range(NB):
            blk0 = x_ref[nb, 0:CHUNK, :].astype(jnp.float32)      # (CHUNK, HW)
            if n_chunks <= 16:
                acc_s, acc_m = blk0, blk0
                for ci in range(1, n_chunks):
                    blk = x_ref[nb, ci * CHUNK:(ci + 1) * CHUNK, :].astype(jnp.float32)
                    acc_s = acc_s + blk
                    acc_m = jnp.maximum(acc_m, blk)
            else:
                def body(ci, carry):
                    s, m = carry
                    start = pl.multiple_of(ci * CHUNK, CHUNK)
                    blk = x_ref[nb, pl.ds(start, CHUNK), :].astype(jnp.float32)
                    return s + blk, jnp.maximum(m, blk)
                acc_s, acc_m = lax.fori_loop(1, n_chunks, body, (blk0, blk0),
                                             unroll=2)

            # one cross-sublane reduce per map (not one per chunk)
            avg = jnp.sum(acc_s, axis=0, keepdims=True) * inv_c   # (1, HW)
            mx = jnp.max(acc_m, axis=0, keepdims=True)            # (1, HW)

            # aligned (DATA_OFF % 128 == 0) lane-dense stores into the flat map
            padf_ref[0, nb:nb + 1, DATA_OFF:DATA_OFF + HW] = avg
            padf_ref[1, nb:nb + 1, DATA_OFF:DATA_OFF + HW] = mx

        # ---- 7x7 conv on the flat maps, all NB images packed along lanes ----
        # hoisted: 98 SMEM scalar reads, once per grid step (not per image)
        wv = [w_ref[i] for i in range(2 * KSIZE * KSIZE)]

        conv = None
        for kx in range(KSIZE):                    # 7 independent partial chains
            part = None
            for c in range(2):
                for ky in range(KSIZE):
                    start = base_off + ky * W + kx
                    tap = padf_ref[c, :, start:start + HW]        # (NB, HW)
                    term = wv[c * KSIZE * KSIZE + ky * KSIZE + kx] * tap
                    part = term if part is None else part + term
            masked = mask_ref[kx:kx + 1, :] * part                # (1,HW)*(NB,HW)
            conv = masked if conv is None else conv + masked

        o_ref[0] = jax.nn.sigmoid(conv).astype(o_ref.dtype)       # lane-dense store

    return kernel


def spatial_attention(x, conv_weight):
    """x: (N, C, H, W); conv_weight: (1, 2, 7, 7). Returns (N, 1, H, W)."""
    N, C, H, W = x.shape
    HW = H * W
    itemsize = x.dtype.itemsize

    # Lane-dense layout for the HBM-bound channel reduction.
    x2 = x.reshape(N, C, HW)
    w_flat = conv_weight.reshape(-1).astype(jnp.float32)          # (98,) [c, ky, kx]

    # Column-validity masks (depend only on output column and kx); computed
    # host-side so the kernel needs no integer mod.
    cols = np.arange(HW, dtype=np.int64) % W
    masks_np = np.stack(
        [((cols + (kx - PAD) >= 0) & (cols + (kx - PAD) < W)).astype(np.float32)
         for kx in range(KSIZE)], axis=0)                         # (7, HW)
    masks = jnp.asarray(masks_np)

    # Dtype-aware chunk (sublane packing: 8 f32 / 16 bf16 / 32 int8), dividing C.
    base = {4: 8, 2: 16, 1: 32}.get(itemsize, 8)
    CHUNK = min(C, base)
    while C % CHUNK:
        CHUNK -= 1

    # Padded flat-map geometry: data starts at a 128-aligned lane offset.
    DATA_OFF = _round_up(PAD * W + PAD, 128)
    HWpad = _round_up(DATA_OFF + HW + PAD * W + PAD, 128)

    # VMEM-capacity-aware block sizing (v5e/v6e: 128 MiB, v7x: 64 MiB per core).
    try:
        info = pltpu.get_tpu_info()
        vmem_cap = getattr(info, "vmem_capacity_bytes", None) or (64 << 20)
    except Exception:
        vmem_cap = 64 << 20
    big_vmem = vmem_cap >= (100 << 20)
    block_cap = (16 << 20) if big_vmem else (4 << 20)

    NB = 1
    for cand in (8, 4, 2):
        if N % cand == 0 and cand * C * HW * itemsize <= block_cap:
            NB = cand
            break

    kernel = _make_kernel(NB, C, H, W, CHUNK, HWpad, DATA_OFF)

    # Tile-padding-aware VMEM budget (last two dims pad to (sublane, 128)).
    def padded_bytes(shape, isz, sub=8):
        lead = int(np.prod(shape[:-2])) if len(shape) > 2 else 1
        s2 = _round_up(int(shape[-2]), sub)
        s1 = _round_up(int(shape[-1]), 128)
        return lead * s2 * s1 * isz

    sub_in = {4: 8, 2: 16, 1: 32}.get(itemsize, 8)
    need = (2 * padded_bytes((NB, C, HW), itemsize, sub_in)   # x block, dbl-buffered
            + 2 * padded_bytes((KSIZE, HW), 4)                # masks block
            + 2 * padded_bytes((1, NB, HW), itemsize)         # out block
            + padded_bytes((2, NB, HWpad), 4)                 # padded-map scratch
            + (2 << 20))
    ceiling = (96 << 20) if big_vmem else (40 << 20)
    vmem_limit = int(min(max(need, 16 << 20), ceiling))

    grid_spec = pltpu.PrefetchScalarGridSpec(
        num_scalar_prefetch=1,                    # conv weights -> SMEM, loaded once
        grid=(N // NB,),
        in_specs=[pl.BlockSpec((KSIZE, HW), lambda b, w: (0, 0)),
                  pl.BlockSpec((NB, C, HW), lambda b, w: (b, 0, 0))],
        out_specs=pl.BlockSpec((1, NB, HW), lambda b, w: (b, 0, 0)),
        scratch_shapes=[pltpu.VMEM((2, NB, HWpad), jnp.float32)],
    )

    out = pl.pallas_call(
        kernel,
        out_shape=jax.ShapeDtypeStruct((N // NB, NB, HW), x.dtype),
        grid_spec=grid_spec,
        compiler_params=pltpu.CompilerParams(
            dimension_semantics=("parallel",),    # batch axis shards across TCs
            vmem_limit_bytes=vmem_limit,
        ),
    )(w_flat, masks, x2)

    return out.reshape(N, 1, H, W)


def _reference(x, conv_weight):
    """Plain-JAX reference matching the PyTorch forward."""
    avg = jnp.mean(x, axis=1, keepdims=True)
    mx = jnp.max(x, axis=1, keepdims=True)
    cat = jnp.concatenate([avg, mx], axis=1)                      # (N,2,H,W)
    out = lax.conv_general_dilated(
        cat, conv_weight, window_strides=(1, 1),
        padding=((PAD, PAD), (PAD, PAD)),
        dimension_numbers=("NCHW", "OIHW", "NCHW"))
    return jax.nn.sigmoid(out)


if __name__ == "__main__":
    key = jax.random.PRNGKey(0)
    k_x, k_w = jax.random.split(key)

    N, C, H, W = 2, 4, 16, 16
    x = jax.random.normal(k_x, (N, C, H, W), dtype=jnp.float32)

    # Deterministic conv weight init (PyTorch-default-like uniform bound).
    fan_in = 2 * KSIZE * KSIZE
    bound = 1.0 / np.sqrt(fan_in)
    conv_weight = jax.random.uniform(
        k_w, (1, 2, KSIZE, KSIZE), minval=-bound, maxval=bound, dtype=jnp.float32)

    out = spatial_attention(x, conv_weight)
    out = jax.block_until_ready(out)

    ref = _reference(x, conv_weight)
    assert out.shape == (N, 1, H, W)
    np.testing.assert_allclose(np.asarray(out), np.asarray(ref), atol=1e-5, rtol=1e-5)

    print("KERNEL_OK")
</pallas_src>

<mosaic_0001>
module attributes {stable_mosaic.version = 11 : i64} {
  func.func @kernel(%arg0: i32, %arg1: memref<98xf32, #tpu.memory_space<smem>>, %arg2: memref<7x256xf32, #tpu.memory_space<vmem>>, %arg3: memref<2x4x256xf32, #tpu.memory_space<vmem>>, %arg4: memref<1x2x256xf32, #tpu.memory_space<vmem>>, %arg5: memref<2x2x512xf32, #tpu.memory_space<vmem>>) attributes {dimension_semantics = [#tpu.dimension_semantics<parallel>], iteration_bounds = array<i64: 1>, scalar_prefetch = 1 : i64, scratch_operands = 1 : i64, tpu.core_type = #tpu.core_type<tc>, window_params = [{pipeline_mode = #tpu.pipeline_mode<synchronous>, transform_indices = @transform_0, window_bounds = array<i64: 7, 256>}, {transform_indices = @transform_1, window_bounds = array<i64: 2, 4, 256>}, {transform_indices = @transform_2, window_bounds = array<i64: 1, 2, 256>}]} {
    %cst = arith.constant 0.000000e+00 : f32
    %0 = vector.broadcast %cst : f32 to vector<2x2x512xf32>
    %c0 = arith.constant 0 : index
    %c0_0 = arith.constant 0 : index
    %c0_1 = arith.constant 0 : index
    %1 = vector.load %arg5[%c0, %c0_0, %c0_1] : memref<2x2x512xf32, #tpu.memory_space<vmem>>, vector<2x2x512xf32>
    tpu.vector_store %arg5[%c0, %c0_0, %c0_1], %0 {strides = array<i32>} : memref<2x2x512xf32, #tpu.memory_space<vmem>>, vector<2x2x512xf32>,
    %c0_2 = arith.constant 0 : index
    %c0_3 = arith.constant 0 : index
    %c0_4 = arith.constant 0 : index
    %2 = vector.load %arg3[%c0_2, %c0_3, %c0_4] : memref<2x4x256xf32, #tpu.memory_space<vmem>>, vector<1x4x256xf32>
    %3 = vector.shape_cast %2 : vector<1x4x256xf32> to vector<4x256xf32>
    %cst_5 = arith.constant dense<0.000000e+00> : vector<256xf32>
    %4 = vector.multi_reduction <add>, %3, %cst_5 [0] : vector<4x256xf32> to vector<256xf32>
    %5 = vector.shape_cast %4 : vector<256xf32> to vector<1x256xf32>
    %cst_6 = arith.constant 2.500000e-01 : f32
    %6 = vector.broadcast %cst_6 : f32 to vector<1x256xf32>
    %7 = arith.mulf %5, %6 : vector<1x256xf32>
    %cst_7 = arith.constant dense<0xFF800000> : vector<256xf32>
    %8 = vector.multi_reduction <maximumf>, %3, %cst_7 [0] : vector<4x256xf32> to vector<256xf32>
    %9 = vector.shape_cast %8 : vector<256xf32> to vector<1x256xf32>
    %c0_8 = arith.constant 0 : index
    %c0_9 = arith.constant 0 : index
    %c128 = arith.constant 128 : index
    %10 = vector.load %arg5[%c0_8, %c0_9, %c128] : memref<2x2x512xf32, #tpu.memory_space<vmem>>, vector<1x1x256xf32>
    %11 = vector.shape_cast %10 : vector<1x1x256xf32> to vector<1x256xf32>
    %12 = vector.shape_cast %7 : vector<1x256xf32> to vector<1x1x256xf32>
    tpu.vector_store %arg5[%c0_8, %c0_9, %c128], %12 {strides = array<i32>} : memref<2x2x512xf32, #tpu.memory_space<vmem>>, vector<1x1x256xf32>,
    %c1 = arith.constant 1 : index
    %c0_10 = arith.constant 0 : index
    %c128_11 = arith.constant 128 : index
    %13 = vector.load %arg5[%c1, %c0_10, %c128_11] : memref<2x2x512xf32, #tpu.memory_space<vmem>>, vector<1x1x256xf32>
    %14 = vector.shape_cast %13 : vector<1x1x256xf32> to vector<1x256xf32>
    %15 = vector.shape_cast %9 : vector<1x256xf32> to vector<1x1x256xf32>
    tpu.vector_store %arg5[%c1, %c0_10, %c128_11], %15 {strides = array<i32>} : memref<2x2x512xf32, #tpu.memory_space<vmem>>, vector<1x1x256xf32>,
    %c1_12 = arith.constant 1 : index
    %c0_13 = arith.constant 0 : index
    %c0_14 = arith.constant 0 : index
    %16 = vector.load %arg3[%c1_12, %c0_13, %c0_14] : memref<2x4x256xf32, #tpu.memory_space<vmem>>, vector<1x4x256xf32>
    %17 = vector.shape_cast %16 : vector<1x4x256xf32> to vector<4x256xf32>
    %cst_15 = arith.constant dense<0.000000e+00> : vector<256xf32>
    %18 = vector.multi_reduction <add>, %17, %cst_15 [0] : vector<4x256xf32> to vector<256xf32>
    %19 = vector.shape_cast %18 : vector<256xf32> to vector<1x256xf32>
    %cst_16 = arith.constant 2.500000e-01 : f32
    %20 = vector.broadcast %cst_16 : f32 to vector<1x256xf32>
    %21 = arith.mulf %19, %20 : vector<1x256xf32>
    %cst_17 = arith.constant dense<0xFF800000> : vector<256xf32>
    %22 = vector.multi_reduction <maximumf>, %17, %cst_17 [0] : vector<4x256xf32> to vector<256xf32>
    %23 = vector.shape_cast %22 : vector<256xf32> to vector<1x256xf32>
    %c0_18 = arith.constant 0 : index
    %c1_19 = arith.constant 1 : index
    %c128_20 = arith.constant 128 : index
    %24 = vector.load %arg5[%c0_18, %c1_19, %c128_20] : memref<2x2x512xf32, #tpu.memory_space<vmem>>, vector<1x1x256xf32>
    %25 = vector.shape_cast %24 : vector<1x1x256xf32> to vector<1x256xf32>
    %26 = vector.shape_cast %21 : vector<1x256xf32> to vector<1x1x256xf32>
    tpu.vector_store %arg5[%c0_18, %c1_19, %c128_20], %26 {strides = array<i32>} : memref<2x2x512xf32, #tpu.memory_space<vmem>>, vector<1x1x256xf32>,
    %c1_21 = arith.constant 1 : index
    %c1_22 = arith.constant 1 : index
    %c128_23 = arith.constant 128 : index
    %27 = vector.load %arg5[%c1_21, %c1_22, %c128_23] : memref<2x2x512xf32, #tpu.memory_space<vmem>>, vector<1x1x256xf32>
    %28 = vector.shape_cast %27 : vector<1x1x256xf32> to vector<1x256xf32>
    %29 = vector.shape_cast %23 : vector<1x256xf32> to vector<1x1x256xf32>
    tpu.vector_store %arg5[%c1_21, %c1_22, %c128_23], %29 {strides = array<i32>} : memref<2x2x512xf32, #tpu.memory_space<vmem>>, vector<1x1x256xf32>,
    %c0_24 = arith.constant 0 : index
    %30 = memref.load %arg1[%c0_24] : memref<98xf32, #tpu.memory_space<smem>>
    %c1_25 = arith.constant 1 : index
    %31 = memref.load %arg1[%c1_25] : memref<98xf32, #tpu.memory_space<smem>>
    %c2 = arith.constant 2 : index
    %32 = memref.load %arg1[%c2] : memref<98xf32, #tpu.memory_space<smem>>
    %c3 = arith.constant 3 : index
    %33 = memref.load %arg1[%c3] : memref<98xf32, #tpu.memory_space<smem>>
    %c4 = arith.constant 4 : index
    %34 = memref.load %arg1[%c4] : memref<98xf32, #tpu.memory_space<smem>>
    %c5 = arith.constant 5 : index
    %35 = memref.load %arg1[%c5] : memref<98xf32, #tpu.memory_space<smem>>
    %c6 = arith.constant 6 : index
    %36 = memref.load %arg1[%c6] : memref<98xf32, #tpu.memory_space<smem>>
    %c7 = arith.constant 7 : index
    %37 = memref.load %arg1[%c7] : memref<98xf32, #tpu.memory_space<smem>>
    %c8 = arith.constant 8 : index
    %38 = memref.load %arg1[%c8] : memref<98xf32, #tpu.memory_space<smem>>
    %c9 = arith.constant 9 : index
    %39 = memref.load %arg1[%c9] : memref<98xf32, #tpu.memory_space<smem>>
    %c10 = arith.constant 10 : index
    %40 = memref.load %arg1[%c10] : memref<98xf32, #tpu.memory_space<smem>>
    %c11 = arith.constant 11 : index
    %41 = memref.load %arg1[%c11] : memref<98xf32, #tpu.memory_space<smem>>
    %c12 = arith.constant 12 : index
    %42 = memref.load %arg1[%c12] : memref<98xf32, #tpu.memory_space<smem>>
    %c13 = arith.constant 13 : index
    %43 = memref.load %arg1[%c13] : memref<98xf32, #tpu.memory_space<smem>>
    %c14 = arith.constant 14 : index
    %44 = memref.load %arg1[%c14] : memref<98xf32, #tpu.memory_space<smem>>
    %c15 = arith.constant 15 : index
    %45 = memref.load %arg1[%c15] : memref<98xf32, #tpu.memory_space<smem>>
    %c16 = arith.constant 16 : index
    %46 = memref.load %arg1[%c16] : memref<98xf32, #tpu.memory_space<smem>>
    %c17 = arith.constant 17 : index
    %47 = memref.load %arg1[%c17] : memref<98xf32, #tpu.memory_space<smem>>
    %c18 = arith.constant 18 : index
    %48 = memref.load %arg1[%c18] : memref<98xf32, #tpu.memory_space<smem>>
    %c19 = arith.constant 19 : index
    %49 = memref.load %arg1[%c19] : memref<98xf32, #tpu.memory_space<smem>>
    %c20 = arith.constant 20 : index
    %50 = memref.load %arg1[%c20] : memref<98xf32, #tpu.memory_space<smem>>
    %c21 = arith.constant 21 : index
    %51 = memref.load %arg1[%c21] : memref<98xf32, #tpu.memory_space<smem>>
    %c22 = arith.constant 22 : index
    %52 = memref.load %arg1[%c22] : memref<98xf32, #tpu.memory_space<smem>>
    %c23 = arith.constant 23 : index
    %53 = memref.load %arg1[%c23] : memref<98xf32, #tpu.memory_space<smem>>
    %c24 = arith.constant 24 : index
    %54 = memref.load %arg1[%c24] : memref<98xf32, #tpu.memory_space<smem>>
    %c25 = arith.constant 25 : index
    %55 = memref.load %arg1[%c25] : memref<98xf32, #tpu.memory_space<smem>>
    %c26 = arith.constant 26 : index
    %56 = memref.load %arg1[%c26] : memref<98xf32, #tpu.memory_space<smem>>
    %c27 = arith.constant 27 : index
    %57 = memref.load %arg1[%c27] : memref<98xf32, #tpu.memory_space<smem>>
    %c28 = arith.constant 28 : index
    %58 = memref.load %arg1[%c28] : memref<98xf32, #tpu.memory_space<smem>>
    %c29 = arith.constant 29 : index
    %59 = memref.load %arg1[%c29] : memref<98xf32, #tpu.memory_space<smem>>
    %c30 = arith.constant 30 : index
    %60 = memref.load %arg1[%c30] : memref<98xf32, #tpu.memory_space<smem>>
    %c31 = arith.constant 31 : index
    %61 = memref.load %arg1[%c31] : memref<98xf32, #tpu.memory_space<smem>>
    %c32 = arith.constant 32 : index
    %62 = memref.load %arg1[%c32] : memref<98xf32, #tpu.memory_space<smem>>
    %c33 = arith.constant 33 : index
    %63 = memref.load %arg1[%c33] : memref<98xf32, #tpu.memory_space<smem>>
    %c34 = arith.constant 34 : index
    %64 = memref.load %arg1[%c34] : memref<98xf32, #tpu.memory_space<smem>>
    %c35 = arith.constant 35 : index
    %65 = memref.load %arg1[%c35] : memref<98xf32, #tpu.memory_space<smem>>
    %c36 = arith.constant 36 : index
    %66 = memref.load %arg1[%c36] : memref<98xf32, #tpu.memory_space<smem>>
    %c37 = arith.constant 37 : index
    %67 = memref.load %arg1[%c37] : memref<98xf32, #tpu.memory_space<smem>>
    %c38 = arith.constant 38 : index
    %68 = memref.load %arg1[%c38] : memref<98xf32, #tpu.memory_space<smem>>
    %c39 = arith.constant 39 : index
    %69 = memref.load %arg1[%c39] : memref<98xf32, #tpu.memory_space<smem>>
    %c40 = arith.constant 40 : index
    %70 = memref.load %arg1[%c40] : memref<98xf32, #tpu.memory_space<smem>>
    %c41 = arith.constant 41 : index
    %71 = memref.load %arg1[%c41] : memref<98xf32, #tpu.memory_space<smem>>
    %c42 = arith.constant 42 : index
    %72 = memref.load %arg1[%c42] : memref<98xf32, #tpu.memory_space<smem>>
    %c43 = arith.constant 43 : index
    %73 = memref.load %arg1[%c43] : memref<98xf32, #tpu.memory_space<smem>>
    %c44 = arith.constant 44 : index
    %74 = memref.load %arg1[%c44] : memref<98xf32, #tpu.memory_space<smem>>
    %c45 = arith.constant 45 : index
    %75 = memref.load %arg1[%c45] : memref<98xf32, #tpu.memory_space<smem>>
    %c46 = arith.constant 46 : index
    %76 = memref.load %arg1[%c46] : memref<98xf32, #tpu.memory_space<smem>>
    %c47 = arith.constant 47 : index
    %77 = memref.load %arg1[%c47] : memref<98xf32, #tpu.memory_space<smem>>
    %c48 = arith.constant 48 : index
    %78 = memref.load %arg1[%c48] : memref<98xf32, #tpu.memory_space<smem>>
    %c49 = arith.constant 49 : index
    %79 = memref.load %arg1[%c49] : memref<98xf32, #tpu.memory_space<smem>>
    %c50 = arith.constant 50 : index
    %80 = memref.load %arg1[%c50] : memref<98xf32, #tpu.memory_space<smem>>
    %c51 = arith.constant 51 : index
    %81 = memref.load %arg1[%c51] : memref<98xf32, #tpu.memory_space<smem>>
    %c52 = arith.constant 52 : index
    %82 = memref.load %arg1[%c52] : memref<98xf32, #tpu.memory_space<smem>>
    %c53 = arith.constant 53 : index
    %83 = memref.load %arg1[%c53] : memref<98xf32, #tpu.memory_space<smem>>
    %c54 = arith.constant 54 : index
    %84 = memref.load %arg1[%c54] : memref<98xf32, #tpu.memory_space<smem>>
    %c55 = arith.constant 55 : index
    %85 = memref.load %arg1[%c55] : memref<98xf32, #tpu.memory_space<smem>>
    %c56 = arith.constant 56 : index
    %86 = memref.load %arg1[%c56] : memref<98xf32, #tpu.memory_space<smem>>
    %c57 = arith.constant 57 : index
    %87 = memref.load %arg1[%c57] : memref<98xf32, #tpu.memory_space<smem>>
    %c58 = arith.constant 58 : index
    %88 = memref.load %arg1[%c58] : memref<98xf32, #tpu.memory_space<smem>>
    %c59 = arith.constant 59 : index
    %89 = memref.load %arg1[%c59] : memref<98xf32, #tpu.memory_space<smem>>
    %c60 = arith.constant 60 : index
    %90 = memref.load %arg1[%c60] : memref<98xf32, #tpu.memory_space<smem>>
    %c61 = arith.constant 61 : index
    %91 = memref.load %arg1[%c61] : memref<98xf32, #tpu.memory_space<smem>>
    %c62 = arith.constant 62 : index
    %92 = memref.load %arg1[%c62] : memref<98xf32, #tpu.memory_space<smem>>
    %c63 = arith.constant 63 : index
    %93 = memref.load %arg1[%c63] : memref<98xf32, #tpu.memory_space<smem>>
    %c64 = arith.constant 64 : index
    %94 = memref.load %arg1[%c64] : memref<98xf32, #tpu.memory_space<smem>>
    %c65 = arith.constant 65 : index
    %95 = memref.load %arg1[%c65] : memref<98xf32, #tpu.memory_space<smem>>
    %c66 = arith.constant 66 : index
    %96 = memref.load %arg1[%c66] : memref<98xf32, #tpu.memory_space<smem>>
    %c67 = arith.constant 67 : index
    %97 = memref.load %arg1[%c67] : memref<98xf32, #tpu.memory_space<smem>>
    %c68 = arith.constant 68 : index
    %98 = memref.load %arg1[%c68] : memref<98xf32, #tpu.memory_space<smem>>
    %c69 = arith.constant 69 : index
    %99 = memref.load %arg1[%c69] : memref<98xf32, #tpu.memory_space<smem>>
    %c70 = arith.constant 70 : index
    %100 = memref.load %arg1[%c70] : memref<98xf32, #tpu.memory_space<smem>>
    %c71 = arith.constant 71 : index
    %101 = memref.load %arg1[%c71] : memref<98xf32, #tpu.memory_space<smem>>
    %c72 = arith.constant 72 : index
    %102 = memref.load %arg1[%c72] : memref<98xf32, #tpu.memory_space<smem>>
    %c73 = arith.constant 73 : index
    %103 = memref.load %arg1[%c73] : memref<98xf32, #tpu.memory_space<smem>>
    %c74 = arith.constant 74 : index
    %104 = memref.load %arg1[%c74] : memref<98xf32, #tpu.memory_space<smem>>
    %c75 = arith.constant 75 : index
    %105 = memref.load %arg1[%c75] : memref<98xf32, #tpu.memory_space<smem>>
    %c76 = arith.constant 76 : index
    %106 = memref.load %arg1[%c76] : memref<98xf32, #tpu.memory_space<smem>>
    %c77 = arith.constant 77 : index
    %107 = memref.load %arg1[%c77] : memref<98xf32, #tpu.memory_space<smem>>
    %c78 = arith.constant 78 : index
    %108 = memref.load %arg1[%c78] : memref<98xf32, #tpu.memory_space<smem>>
    %c79 = arith.constant 79 : index
    %109 = memref.load %arg1[%c79] : memref<98xf32, #tpu.memory_space<smem>>
    %c80 = arith.constant 80 : index
    %110 = memref.load %arg1[%c80] : memref<98xf32, #tpu.memory_space<smem>>
    %c81 = arith.constant 81 : index
    %111 = memref.load %arg1[%c81] : memref<98xf32, #tpu.memory_space<smem>>
    %c82 = arith.constant 82 : index
    %112 = memref.load %arg1[%c82] : memref<98xf32, #tpu.memory_space<smem>>
    %c83 = arith.constant 83 : index
    %113 = memref.load %arg1[%c83] : memref<98xf32, #tpu.memory_space<smem>>
    %c84 = arith.constant 84 : index
    %114 = memref.load %arg1[%c84] : memref<98xf32, #tpu.memory_space<smem>>
    %c85 = arith.constant 85 : index
    %115 = memref.load %arg1[%c85] : memref<98xf32, #tpu.memory_space<smem>>
    %c86 = arith.constant 86 : index
    %116 = memref.load %arg1[%c86] : memref<98xf32, #tpu.memory_space<smem>>
    %c87 = arith.constant 87 : index
    %117 = memref.load %arg1[%c87] : memref<98xf32, #tpu.memory_space<smem>>
    %c88 = arith.constant 88 : index
    %118 = memref.load %arg1[%c88] : memref<98xf32, #tpu.memory_space<smem>>
    %c89 = arith.constant 89 : index
    %119 = memref.load %arg1[%c89] : memref<98xf32, #tpu.memory_space<smem>>
    %c90 = arith.constant 90 : index
    %120 = memref.load %arg1[%c90] : memref<98xf32, #tpu.memory_space<smem>>
    %c91 = arith.constant 91 : index
    %121 = memref.load %arg1[%c91] : memref<98xf32, #tpu.memory_space<smem>>
    %c92 = arith.constant 92 : index
    %122 = memref.load %arg1[%c92] : memref<98xf32, #tpu.memory_space<smem>>
    %c93 = arith.constant 93 : index
    %123 = memref.load %arg1[%c93] : memref<98xf32, #tpu.memory_space<smem>>
    %c94 = arith.constant 94 : index
    %124 = memref.load %arg1[%c94] : memref<98xf32, #tpu.memory_space<smem>>
    %c95 = arith.constant 95 : index
    %125 = memref.load %arg1[%c95] : memref<98xf32, #tpu.memory_space<smem>>
    %c96 = arith.constant 96 : index
    %126 = memref.load %arg1[%c96] : memref<98xf32, #tpu.memory_space<smem>>
    %c97 = arith.constant 97 : index
    %127 = memref.load %arg1[%c97] : memref<98xf32, #tpu.memory_space<smem>>
    %c0_26 = arith.constant 0 : index
    %c0_27 = arith.constant 0 : index
    %c77_28 = arith.constant 77 : index
    %128 = vector.load %arg5[%c0_26, %c0_27, %c77_28] : memref<2x2x512xf32, #tpu.memory_space<vmem>>, vector<1x2x256xf32>
    %129 = vector.shape_cast %128 : vector<1x2x256xf32> to vector<2x256xf32>
    %130 = vector.broadcast %30 : f32 to vector<2x256xf32>
    %131 = arith.mulf %130, %129 : vector<2x256xf32>
    %c0_29 = arith.constant 0 : index
    %c0_30 = arith.constant 0 : index
    %c93_31 = arith.constant 93 : index
    %132 = vector.load %arg5[%c0_29, %c0_30, %c93_31] : memref<2x2x512xf32, #tpu.memory_space<vmem>>, vector<1x2x256xf32>
    %133 = vector.shape_cast %132 : vector<1x2x256xf32> to vector<2x256xf32>
    %134 = vector.broadcast %37 : f32 to vector<2x256xf32>
    %135 = arith.mulf %134, %133 : vector<2x256xf32>
    %136 = arith.addf %131, %135 : vector<2x256xf32>
    %c0_32 = arith.constant 0 : index
    %c0_33 = arith.constant 0 : index
    %c109 = arith.constant 109 : index
    %137 = vector.load %arg5[%c0_32, %c0_33, %c109] : memref<2x2x512xf32, #tpu.memory_space<vmem>>, vector<1x2x256xf32>
    %138 = vector.shape_cast %137 : vector<1x2x256xf32> to vector<2x256xf32>
    %139 = vector.broadcast %44 : f32 to vector<2x256xf32>
    %140 = arith.mulf %139, %138 : vector<2x256xf32>
    %141 = arith.addf %136, %140 : vector<2x256xf32>
    %c0_34 = arith.constant 0 : index
    %c0_35 = arith.constant 0 : index
    %c125 = arith.constant 125 : index
    %142 = vector.load %arg5[%c0_34, %c0_35, %c125] : memref<2x2x512xf32, #tpu.memory_space<vmem>>, vector<1x2x256xf32>
    %143 = vector.shape_cast %142 : vector<1x2x256xf32> to vector<2x256xf32>
    %144 = vector.broadcast %51 : f32 to vector<2x256xf32>
    %145 = arith.mulf %144, %143 : vector<2x256xf32>
    %146 = arith.addf %141, %145 : vector<2x256xf32>
    %c0_36 = arith.constant 0 : index
    %c0_37 = arith.constant 0 : index
    %c141 = arith.constant 141 : index
    %147 = vector.load %arg5[%c0_36, %c0_37, %c141] : memref<2x2x512xf32, #tpu.memory_space<vmem>>, vector<1x2x256xf32>
    %148 = vector.shape_cast %147 : vector<1x2x256xf32> to vector<2x256xf32>
    %149 = vector.broadcast %58 : f32 to vector<2x256xf32>
    %150 = arith.mulf %149, %148 : vector<2x256xf32>
    %151 = arith.addf %146, %150 : vector<2x256xf32>
    %c0_38 = arith.constant 0 : index
    %c0_39 = arith.constant 0 : index
    %c157 = arith.constant 157 : index
    %152 = vector.load %arg5[%c0_38, %c0_39, %c157] : memref<2x2x512xf32, #tpu.memory_space<vmem>>, vector<1x2x256xf32>
    %153 = vector.shape_cast %152 : vector<1x2x256xf32> to vector<2x256xf32>
    %154 = vector.broadcast %65 : f32 to vector<2x256xf32>
    %155 = arith.mulf %154, %153 : vector<2x256xf32>
    %156 = arith.addf %151, %155 : vector<2x256xf32>
    %c0_40 = arith.constant 0 : index
    %c0_41 = arith.constant 0 : index
    %c173 = arith.constant 173 : index
    %157 = vector.load %arg5[%c0_40, %c0_41, %c173] : memref<2x2x512xf32, #tpu.memory_space<vmem>>, vector<1x2x256xf32>
    %158 = vector.shape_cast %157 : vector<1x2x256xf32> to vector<2x256xf32>
    %159 = vector.broadcast %72 : f32 to vector<2x256xf32>
    %160 = arith.mulf %159, %158 : vector<2x256xf32>
    %161 = arith.addf %156, %160 : vector<2x256xf32>
    %c1_42 = arith.constant 1 : index
    %c0_43 = arith.constant 0 : index
    %c77_44 = arith.constant 77 : index
    %162 = vector.load %arg5[%c1_42, %c0_43, %c77_44] : memref<2x2x512xf32, #tpu.memory_space<vmem>>, vector<1x2x256xf32>
    %163 = vector.shape_cast %162 : vector<1x2x256xf32> to vector<2x256xf32>
    %164 = vector.broadcast %79 : f32 to vector<2x256xf32>
    %165 = arith.mulf %164, %163 : vector<2x256xf32>
    %166 = arith.addf %161, %165 : vector<2x256xf32>
    %c1_45 = arith.constant 1 : index
    %c0_46 = arith.constant 0 : index
    %c93_47 = arith.constant 93 : index
    %167 = vector.load %arg5[%c1_45, %c0_46, %c93_47] : memref<2x2x512xf32, #tpu.memory_space<vmem>>, vector<1x2x256xf32>
    %168 = vector.shape_cast %167 : vector<1x2x256xf32> to vector<2x256xf32>
    %169 = vector.broadcast %86 : f32 to vector<2x256xf32>
    %170 = arith.mulf %169, %168 : vector<2x256xf32>
    %171 = arith.addf %166, %170 : vector<2x256xf32>
    %c1_48 = arith.constant 1 : index
    %c0_49 = arith.constant 0 : index
    %c109_50 = arith.constant 109 : index
    %172 = vector.load %arg5[%c1_48, %c0_49, %c109_50] : memref<2x2x512xf32, #tpu.memory_space<vmem>>, vector<1x2x256xf32>
    %173 = vector.shape_cast %172 : vector<1x2x256xf32> to vector<2x256xf32>
    %174 = vector.broadcast %93 : f32 to vector<2x256xf32>
    %175 = arith.mulf %174, %173 : vector<2x256xf32>
    %176 = arith.addf %171, %175 : vector<2x256xf32>
    %c1_51 = arith.constant 1 : index
    %c0_52 = arith.constant 0 : index
    %c125_53 = arith.constant 125 : index
    %177 = vector.load %arg5[%c1_51, %c0_52, %c125_53] : memref<2x2x512xf32, #tpu.memory_space<vmem>>, vector<1x2x256xf32>
    %178 = vector.shape_cast %177 : vector<1x2x256xf32> to vector<2x256xf32>
    %179 = vector.broadcast %100 : f32 to vector<2x256xf32>
    %180 = arith.mulf %179, %178 : vector<2x256xf32>
    %181 = arith.addf %176, %180 : vector<2x256xf32>
    %c1_54 = arith.constant 1 : index
    %c0_55 = arith.constant 0 : index
    %c141_56 = arith.constant 141 : index
    %182 = vector.load %arg5[%c1_54, %c0_55, %c141_56] : memref<2x2x512xf32, #tpu.memory_space<vmem>>, vector<1x2x256xf32>
    %183 = vector.shape_cast %182 : vector<1x2x256xf32> to vector<2x256xf32>
    %184 = vector.broadcast %107 : f32 to vector<2x256xf32>
    %185 = arith.mulf %184, %183 : vector<2x256xf32>
    %186 = arith.addf %181, %185 : vector<2x256xf32>
    %c1_57 = arith.constant 1 : index
    %c0_58 = arith.constant 0 : index
    %c157_59 = arith.constant 157 : index
    %187 = vector.load %arg5[%c1_57, %c0_58, %c157_59] : memref<2x2x512xf32, #tpu.memory_space<vmem>>, vector<1x2x256xf32>
    %188 = vector.shape_cast %187 : vector<1x2x256xf32> to vector<2x256xf32>
    %189 = vector.broadcast %114 : f32 to vector<2x256xf32>
    %190 = arith.mulf %189, %188 : vector<2x256xf32>
    %191 = arith.addf %186, %190 : vector<2x256xf32>
    %c1_60 = arith.constant 1 : index
    %c0_61 = arith.constant 0 : index
    %c173_62 = arith.constant 173 : index
    %192 = vector.load %arg5[%c1_60, %c0_61, %c173_62] : memref<2x2x512xf32, #tpu.memory_space<vmem>>, vector<1x2x256xf32>
    %193 = vector.shape_cast %192 : vector<1x2x256xf32> to vector<2x256xf32>
    %194 = vector.broadcast %121 : f32 to vector<2x256xf32>
    %195 = arith.mulf %194, %193 : vector<2x256xf32>
    %196 = arith.addf %191, %195 : vector<2x256xf32>
    %c0_63 = arith.constant 0 : index
    %c0_64 = arith.constant 0 : index
    %197 = vector.load %arg2[%c0_63, %c0_64] : memref<7x256xf32, #tpu.memory_space<vmem>>, vector<1x256xf32>
    %198 = vector.broadcast %197 : vector<1x256xf32> to vector<2x256xf32>
    %199 = arith.mulf %198, %196 : vector<2x256xf32>
    %c0_65 = arith.constant 0 : index
    %c0_66 = arith.constant 0 : index
    %c78_67 = arith.constant 78 : index
    %200 = vector.load %arg5[%c0_65, %c0_66, %c78_67] : memref<2x2x512xf32, #tpu.memory_space<vmem>>, vector<1x2x256xf32>
    %201 = vector.shape_cast %200 : vector<1x2x256xf32> to vector<2x256xf32>
    %202 = vector.broadcast %31 : f32 to vector<2x256xf32>
    %203 = arith.mulf %202, %201 : vector<2x256xf32>
    %c0_68 = arith.constant 0 : index
    %c0_69 = arith.constant 0 : index
    %c94_70 = arith.constant 94 : index
    %204 = vector.load %arg5[%c0_68, %c0_69, %c94_70] : memref<2x2x512xf32, #tpu.memory_space<vmem>>, vector<1x2x256xf32>
    %205 = vector.shape_cast %204 : vector<1x2x256xf32> to vector<2x256xf32>
    %206 = vector.broadcast %38 : f32 to vector<2x256xf32>
    %207 = arith.mulf %206, %205 : vector<2x256xf32>
    %208 = arith.addf %203, %207 : vector<2x256xf32>
    %c0_71 = arith.constant 0 : index
    %c0_72 = arith.constant 0 : index
    %c110 = arith.constant 110 : index
    %209 = vector.load %arg5[%c0_71, %c0_72, %c110] : memref<2x2x512xf32, #tpu.memory_space<vmem>>, vector<1x2x256xf32>
    %210 = vector.shape_cast %209 : vector<1x2x256xf32> to vector<2x256xf32>
    %211 = vector.broadcast %45 : f32 to vector<2x256xf32>
    %212 = arith.mulf %211, %210 : vector<2x256xf32>
    %213 = arith.addf %208, %212 : vector<2x256xf32>
    %c0_73 = arith.constant 0 : index
    %c0_74 = arith.constant 0 : index
    %c126 = arith.constant 126 : index
    %214 = vector.load %arg5[%c0_73, %c0_74, %c126] : memref<2x2x512xf32, #tpu.memory_space<vmem>>, vector<1x2x256xf32>
    %215 = vector.shape_cast %214 : vector<1x2x256xf32> to vector<2x256xf32>
    %216 = vector.broadcast %52 : f32 to vector<2x256xf32>
    %217 = arith.mulf %216, %215 : vector<2x256xf32>
    %218 = arith.addf %213, %217 : vector<2x256xf32>
    %c0_75 = arith.constant 0 : index
    %c0_76 = arith.constant 0 : index
    %c142 = arith.constant 142 : index
    %219 = vector.load %arg5[%c0_75, %c0_76, %c142] : memref<2x2x512xf32, #tpu.memory_space<vmem>>, vector<1x2x256xf32>
    %220 = vector.shape_cast %219 : vector<1x2x256xf32> to vector<2x256xf32>
    %221 = vector.broadcast %59 : f32 to vector<2x256xf32>
    %222 = arith.mulf %221, %220 : vector<2x256xf32>
    %223 = arith.addf %218, %222 : vector<2x256xf32>
    %c0_77 = arith.constant 0 : index
    %c0_78 = arith.constant 0 : index
    %c158 = arith.constant 158 : index
    %224 = vector.load %arg5[%c0_77, %c0_78, %c158] : memref<2x2x512xf32, #tpu.memory_space<vmem>>, vector<1x2x256xf32>
    %225 = vector.shape_cast %224 : vector<1x2x256xf32> to vector<2x256xf32>
    %226 = vector.broadcast %66 : f32 to vector<2x256xf32>
    %227 = arith.mulf %226, %225 : vector<2x256xf32>
    %228 = arith.addf %223, %227 : vector<2x256xf32>
    %c0_79 = arith.constant 0 : index
    %c0_80 = arith.constant 0 : index
    %c174 = arith.constant 174 : index
    %229 = vector.load %arg5[%c0_79, %c0_80, %c174] : memref<2x2x512xf32, #tpu.memory_space<vmem>>, vector<1x2x256xf32>
    %230 = vector.shape_cast %229 : vector<1x2x256xf32> to vector<2x256xf32>
    %231 = vector.broadcast %73 : f32 to vector<2x256xf32>
    %232 = arith.mulf %231, %230 : vector<2x256xf32>
    %233 = arith.addf %228, %232 : vector<2x256xf32>
    %c1_81 = arith.constant 1 : index
    %c0_82 = arith.constant 0 : index
    %c78_83 = arith.constant 78 : index
    %234 = vector.load %arg5[%c1_81, %c0_82, %c78_83] : memref<2x2x512xf32, #tpu.memory_space<vmem>>, vector<1x2x256xf32>
    %235 = vector.shape_cast %234 : vector<1x2x256xf32> to vector<2x256xf32>
    %236 = vector.broadcast %80 : f32 to vector<2x256xf32>
    %237 = arith.mulf %236, %235 : vector<2x256xf32>
    %238 = arith.addf %233, %237 : vector<2x256xf32>
    %c1_84 = arith.constant 1 : index
    %c0_85 = arith.constant 0 : index
    %c94_86 = arith.constant 94 : index
    %239 = vector.load %arg5[%c1_84, %c0_85, %c94_86] : memref<2x2x512xf32, #tpu.memory_space<vmem>>, vector<1x2x256xf32>
    %240 = vector.shape_cast %239 : vector<1x2x256xf32> to vector<2x256xf32>
    %241 = vector.broadcast %87 : f32 to vector<2x256xf32>
    %242 = arith.mulf %241, %240 : vector<2x256xf32>
    %243 = arith.addf %238, %242 : vector<2x256xf32>
    %c1_87 = arith.constant 1 : index
    %c0_88 = arith.constant 0 : index
    %c110_89 = arith.constant 110 : index
    %244 = vector.load %arg5[%c1_87, %c0_88, %c110_89] : memref<2x2x512xf32, #tpu.memory_space<vmem>>, vector<1x2x256xf32>
    %245 = vector.shape_cast %244 : vector<1x2x256xf32> to vector<2x256xf32>
    %246 = vector.broadcast %94 : f32 to vector<2x256xf32>
    %247 = arith.mulf %246, %245 : vector<2x256xf32>
    %248 = arith.addf %243, %247 : vector<2x256xf32>
    %c1_90 = arith.constant 1 : index
    %c0_91 = arith.constant 0 : index
    %c126_92 = arith.constant 126 : index
    %249 = vector.load %arg5[%c1_90, %c0_91, %c126_92] : memref<2x2x512xf32, #tpu.memory_space<vmem>>, vector<1x2x256xf32>
    %250 = vector.shape_cast %249 : vector<1x2x256xf32> to vector<2x256xf32>
    %251 = vector.broadcast %101 : f32 to vector<2x256xf32>
    %252 = arith.mulf %251, %250 : vector<2x256xf32>
    %253 = arith.addf %248, %252 : vector<2x256xf32>
    %c1_93 = arith.constant 1 : index
    %c0_94 = arith.constant 0 : index
    %c142_95 = arith.constant 142 : index
    %254 = vector.load %arg5[%c1_93, %c0_94, %c142_95] : memref<2x2x512xf32, #tpu.memory_space<vmem>>, vector<1x2x256xf32>
    %255 = vector.shape_cast %254 : vector<1x2x256xf32> to vector<2x256xf32>
    %256 = vector.broadcast %108 : f32 to vector<2x256xf32>
    %257 = arith.mulf %256, %255 : vector<2x256xf32>
    %258 = arith.addf %253, %257 : vector<2x256xf32>
    %c1_96 = arith.constant 1 : index
    %c0_97 = arith.constant 0 : index
    %c158_98 = arith.constant 158 : index
    %259 = vector.load %arg5[%c1_96, %c0_97, %c158_98] : memref<2x2x512xf32, #tpu.memory_space<vmem>>, vector<1x2x256xf32>
    %260 = vector.shape_cast %259 : vector<1x2x256xf32> to vector<2x256xf32>
    %261 = vector.broadcast %115 : f32 to vector<2x256xf32>
    %262 = arith.mulf %261, %260 : vector<2x256xf32>
    %263 = arith.addf %258, %262 : vector<2x256xf32>
    %c1_99 = arith.constant 1 : index
    %c0_100 = arith.constant 0 : index
    %c174_101 = arith.constant 174 : index
    %264 = vector.load %arg5[%c1_99, %c0_100, %c174_101] : memref<2x2x512xf32, #tpu.memory_space<vmem>>, vector<1x2x256xf32>
    %265 = vector.shape_cast %264 : vector<1x2x256xf32> to vector<2x256xf32>
    %266 = vector.broadcast %122 : f32 to vector<2x256xf32>
    %267 = arith.mulf %266, %265 : vector<2x256xf32>
    %268 = arith.addf %263, %267 : vector<2x256xf32>
    %c1_102 = arith.constant 1 : index
    %c0_103 = arith.constant 0 : index
    %269 = vector.load %arg2[%c1_102, %c0_103] : memref<7x256xf32, #tpu.memory_space<vmem>>, vector<1x256xf32>
    %270 = vector.broadcast %269 : vector<1x256xf32> to vector<2x256xf32>
    %271 = arith.mulf %270, %268 : vector<2x256xf32>
    %272 = arith.addf %199, %271 : vector<2x256xf32>
    %c0_104 = arith.constant 0 : index
    %c0_105 = arith.constant 0 : index
    %c79_106 = arith.constant 79 : index
    %273 = vector.load %arg5[%c0_104, %c0_105, %c79_106] : memref<2x2x512xf32, #tpu.memory_space<vmem>>, vector<1x2x256xf32>
    %274 = vector.shape_cast %273 : vector<1x2x256xf32> to vector<2x256xf32>
    %275 = vector.broadcast %32 : f32 to vector<2x256xf32>
    %276 = arith.mulf %275, %274 : vector<2x256xf32>
    %c0_107 = arith.constant 0 : index
    %c0_108 = arith.constant 0 : index
    %c95_109 = arith.constant 95 : index
    %277 = vector.load %arg5[%c0_107, %c0_108, %c95_109] : memref<2x2x512xf32, #tpu.memory_space<vmem>>, vector<1x2x256xf32>
    %278 = vector.shape_cast %277 : vector<1x2x256xf32> to vector<2x256xf32>
    %279 = vector.broadcast %39 : f32 to vector<2x256xf32>
    %280 = arith.mulf %279, %278 : vector<2x256xf32>
    %281 = arith.addf %276, %280 : vector<2x256xf32>
    %c0_110 = arith.constant 0 : index
    %c0_111 = arith.constant 0 : index
    %c111 = arith.constant 111 : index
    %282 = vector.load %arg5[%c0_110, %c0_111, %c111] : memref<2x2x512xf32, #tpu.memory_space<vmem>>, vector<1x2x256xf32>
    %283 = vector.shape_cast %282 : vector<1x2x256xf32> to vector<2x256xf32>
    %284 = vector.broadcast %46 : f32 to vector<2x256xf32>
    %285 = arith.mulf %284, %283 : vector<2x256xf32>
    %286 = arith.addf %281, %285 : vector<2x256xf32>
    %c0_112 = arith.constant 0 : index
    %c0_113 = arith.constant 0 : index
    %c127 = arith.constant 127 : index
    %287 = vector.load %arg5[%c0_112, %c0_113, %c127] : memref<2x2x512xf32, #tpu.memory_space<vmem>>, vector<1x2x256xf32>
    %288 = vector.shape_cast %287 : vector<1x2x256xf32> to vector<2x256xf32>
    %289 = vector.broadcast %53 : f32 to vector<2x256xf32>
    %290 = arith.mulf %289, %288 : vector<2x256xf32>
    %291 = arith.addf %286, %290 : vector<2x256xf32>
    %c0_114 = arith.constant 0 : index
    %c0_115 = arith.constant 0 : index
    %c143 = arith.constant 143 : index
    %292 = vector.load %arg5[%c0_114, %c0_115, %c143] : memref<2x2x512xf32, #tpu.memory_space<vmem>>, vector<1x2x256xf32>
    %293 = vector.shape_cast %292 : vector<1x2x256xf32> to vector<2x256xf32>
    %294 = vector.broadcast %60 : f32 to vector<2x256xf32>
    %295 = arith.mulf %294, %293 : vector<2x256xf32>
    %296 = arith.addf %291, %295 : vector<2x256xf32>
    %c0_116 = arith.constant 0 : index
    %c0_117 = arith.constant 0 : index
    %c159 = arith.constant 159 : index
    %297 = vector.load %arg5[%c0_116, %c0_117, %c159] : memref<2x2x512xf32, #tpu.memory_space<vmem>>, vector<1x2x256xf32>
    %298 = vector.shape_cast %297 : vector<1x2x256xf32> to vector<2x256xf32>
    %299 = vector.broadcast %67 : f32 to vector<2x256xf32>
    %300 = arith.mulf %299, %298 : vector<2x256xf32>
    %301 = arith.addf %296, %300 : vector<2x256xf32>
    %c0_118 = arith.constant 0 : index
    %c0_119 = arith.constant 0 : index
    %c175 = arith.constant 175 : index
    %302 = vector.load %arg5[%c0_118, %c0_119, %c175] : memref<2x2x512xf32, #tpu.memory_space<vmem>>, vector<1x2x256xf32>
    %303 = vector.shape_cast %302 : vector<1x2x256xf32> to vector<2x256xf32>
    %304 = vector.broadcast %74 : f32 to vector<2x256xf32>
    %305 = arith.mulf %304, %303 : vector<2x256xf32>
    %306 = arith.addf %301, %305 : vector<2x256xf32>
    %c1_120 = arith.constant 1 : index
    %c0_121 = arith.constant 0 : index
    %c79_122 = arith.constant 79 : index
    %307 = vector.load %arg5[%c1_120, %c0_121, %c79_122] : memref<2x2x512xf32, #tpu.memory_space<vmem>>, vector<1x2x256xf32>
    %308 = vector.shape_cast %307 : vector<1x2x256xf32> to vector<2x256xf32>
    %309 = vector.broadcast %81 : f32 to vector<2x256xf32>
    %310 = arith.mulf %309, %308 : vector<2x256xf32>
    %311 = arith.addf %306, %310 : vector<2x256xf32>
    %c1_123 = arith.constant 1 : index
    %c0_124 = arith.constant 0 : index
    %c95_125 = arith.constant 95 : index
    %312 = vector.load %arg5[%c1_123, %c0_124, %c95_125] : memref<2x2x512xf32, #tpu.memory_space<vmem>>, vector<1x2x256xf32>
    %313 = vector.shape_cast %312 : vector<1x2x256xf32> to vector<2x256xf32>
    %314 = vector.broadcast %88 : f32 to vector<2x256xf32>
    %315 = arith.mulf %314, %313 : vector<2x256xf32>
    %316 = arith.addf %311, %315 : vector<2x256xf32>
    %c1_126 = arith.constant 1 : index
    %c0_127 = arith.constant 0 : index
    %c111_128 = arith.constant 111 : index
    %317 = vector.load %arg5[%c1_126, %c0_127, %c111_128] : memref<2x2x512xf32, #tpu.memory_space<vmem>>, vector<1x2x256xf32>
    %318 = vector.shape_cast %317 : vector<1x2x256xf32> to vector<2x256xf32>
    %319 = vector.broadcast %95 : f32 to vector<2x256xf32>
    %320 = arith.mulf %319, %318 : vector<2x256xf32>
    %321 = arith.addf %316, %320 : vector<2x256xf32>
    %c1_129 = arith.constant 1 : index
    %c0_130 = arith.constant 0 : index
    %c127_131 = arith.constant 127 : index
    %322 = vector.load %arg5[%c1_129, %c0_130, %c127_131] : memref<2x2x512xf32, #tpu.memory_space<vmem>>, vector<1x2x256xf32>
    %323 = vector.shape_cast %322 : vector<1x2x256xf32> to vector<2x256xf32>
    %324 = vector.broadcast %102 : f32 to vector<2x256xf32>
    %325 = arith.mulf %324, %323 : vector<2x256xf32>
    %326 = arith.addf %321, %325 : vector<2x256xf32>
    %c1_132 = arith.constant 1 : index
    %c0_133 = arith.constant 0 : index
    %c143_134 = arith.constant 143 : index
    %327 = vector.load %arg5[%c1_132, %c0_133, %c143_134] : memref<2x2x512xf32, #tpu.memory_space<vmem>>, vector<1x2x256xf32>
    %328 = vector.shape_cast %327 : vector<1x2x256xf32> to vector<2x256xf32>
    %329 = vector.broadcast %109 : f32 to vector<2x256xf32>
    %330 = arith.mulf %329, %328 : vector<2x256xf32>
    %331 = arith.addf %326, %330 : vector<2x256xf32>
    %c1_135 = arith.constant 1 : index
    %c0_136 = arith.constant 0 : index
    %c159_137 = arith.constant 159 : index
    %332 = vector.load %arg5[%c1_135, %c0_136, %c159_137] : memref<2x2x512xf32, #tpu.memory_space<vmem>>, vector<1x2x256xf32>
    %333 = vector.shape_cast %332 : vector<1x2x256xf32> to vector<2x256xf32>
    %334 = vector.broadcast %116 : f32 to vector<2x256xf32>
    %335 = arith.mulf %334, %333 : vector<2x256xf32>
    %336 = arith.addf %331, %335 : vector<2x256xf32>
    %c1_138 = arith.constant 1 : index
    %c0_139 = arith.constant 0 : index
    %c175_140 = arith.constant 175 : index
    %337 = vector.load %arg5[%c1_138, %c0_139, %c175_140] : memref<2x2x512xf32, #tpu.memory_space<vmem>>, vector<1x2x256xf32>
    %338 = vector.shape_cast %337 : vector<1x2x256xf32> to vector<2x256xf32>
    %339 = vector.broadcast %123 : f32 to vector<2x256xf32>
    %340 = arith.mulf %339, %338 : vector<2x256xf32>
    %341 = arith.addf %336, %340 : vector<2x256xf32>
    %c2_141 = arith.constant 2 : index
    %c0_142 = arith.constant 0 : index
    %342 = vector.load %arg2[%c2_141, %c0_142] : memref<7x256xf32, #tpu.memory_space<vmem>>, vector<1x256xf32>
    %343 = vector.broadcast %342 : vector<1x256xf32> to vector<2x256xf32>
    %344 = arith.mulf %343, %341 : vector<2x256xf32>
    %345 = arith.addf %272, %344 : vector<2x256xf32>
    %c0_143 = arith.constant 0 : index
    %c0_144 = arith.constant 0 : index
    %c80_145 = arith.constant 80 : index
    %346 = vector.load %arg5[%c0_143, %c0_144, %c80_145] : memref<2x2x512xf32, #tpu.memory_space<vmem>>, vector<1x2x256xf32>
    %347 = vector.shape_cast %346 : vector<1x2x256xf32> to vector<2x256xf32>
    %348 = vector.broadcast %33 : f32 to vector<2x256xf32>
    %349 = arith.mulf %348, %347 : vector<2x256xf32>
    %c0_146 = arith.constant 0 : index
    %c0_147 = arith.constant 0 : index
    %c96_148 = arith.constant 96 : index
    %350 = vector.load %arg5[%c0_146, %c0_147, %c96_148] : memref<2x2x512xf32, #tpu.memory_space<vmem>>, vector<1x2x256xf32>
    %351 = vector.shape_cast %350 : vector<1x2x256xf32> to vector<2x256xf32>
    %352 = vector.broadcast %40 : f32 to vector<2x256xf32>
    %353 = arith.mulf %352, %351 : vector<2x256xf32>
    %354 = arith.addf %349, %353 : vector<2x256xf32>
    %c0_149 = arith.constant 0 : index
    %c0_150 = arith.constant 0 : index
    %c112 = arith.constant 112 : index
    %355 = vector.load %arg5[%c0_149, %c0_150, %c112] : memref<2x2x512xf32, #tpu.memory_space<vmem>>, vector<1x2x256xf32>
    %356 = vector.shape_cast %355 : vector<1x2x256xf32> to vector<2x256xf32>
    %357 = vector.broadcast %47 : f32 to vector<2x256xf32>
    %358 = arith.mulf %357, %356 : vector<2x256xf32>
    %359 = arith.addf %354, %358 : vector<2x256xf32>
    %c0_151 = arith.constant 0 : index
    %c0_152 = arith.constant 0 : index
    %c128_153 = arith.constant 128 : index
    %360 = vector.load %arg5[%c0_151, %c0_152, %c128_153] : memref<2x2x512xf32, #tpu.memory_space<vmem>>, vector<1x2x256xf32>
    %361 = vector.shape_cast %360 : vector<1x2x256xf32> to vector<2x256xf32>
    %362 = vector.broadcast %54 : f32 to vector<2x256xf32>
    %363 = arith.mulf %362, %361 : vector<2x256xf32>
    %364 = arith.addf %359, %363 : vector<2x256xf32>
    %c0_154 = arith.constant 0 : index
    %c0_155 = arith.constant 0 : index
    %c144 = arith.constant 144 : index
    %365 = vector.load %arg5[%c0_154, %c0_155, %c144] : memref<2x2x512xf32, #tpu.memory_space<vmem>>, vector<1x2x256xf32>
    %366 = vector.shape_cast %365 : vector<1x2x256xf32> to vector<2x256xf32>
    %367 = vector.broadcast %61 : f32 to vector<2x256xf32>
    %368 = arith.mulf %367, %366 : vector<2x256xf32>
    %369 = arith.addf %364, %368 : vector<2x256xf32>
    %c0_156 = arith.constant 0 : index
    %c0_157 = arith.constant 0 : index
    %c160 = arith.constant 160 : index
    %370 = vector.load %arg5[%c0_156, %c0_157, %c160] : memref<2x2x512xf32, #tpu.memory_space<vmem>>, vector<1x2x256xf32>
    %371 = vector.shape_cast %370 : vector<1x2x256xf32> to vector<2x256xf32>
    %372 = vector.broadcast %68 : f32 to vector<2x256xf32>
    %373 = arith.mulf %372, %371 : vector<2x256xf32>
    %374 = arith.addf %369, %373 : vector<2x256xf32>
    %c0_158 = arith.constant 0 : index
    %c0_159 = arith.constant 0 : index
    %c176 = arith.constant 176 : index
    %375 = vector.load %arg5[%c0_158, %c0_159, %c176] : memref<2x2x512xf32, #tpu.memory_space<vmem>>, vector<1x2x256xf32>
    %376 = vector.shape_cast %375 : vector<1x2x256xf32> to vector<2x256xf32>
    %377 = vector.broadcast %75 : f32 to vector<2x256xf32>
    %378 = arith.mulf %377, %376 : vector<2x256xf32>
    %379 = arith.addf %374, %378 : vector<2x256xf32>
    %c1_160 = arith.constant 1 : index
    %c0_161 = arith.constant 0 : index
    %c80_162 = arith.constant 80 : index
    %380 = vector.load %arg5[%c1_160, %c0_161, %c80_162] : memref<2x2x512xf32, #tpu.memory_space<vmem>>, vector<1x2x256xf32>
    %381 = vector.shape_cast %380 : vector<1x2x256xf32> to vector<2x256xf32>
    %382 = vector.broadcast %82 : f32 to vector<2x256xf32>
    %383 = arith.mulf %382, %381 : vector<2x256xf32>
    %384 = arith.addf %379, %383 : vector<2x256xf32>
    %c1_163 = arith.constant 1 : index
    %c0_164 = arith.constant 0 : index
    %c96_165 = arith.constant 96 : index
    %385 = vector.load %arg5[%c1_163, %c0_164, %c96_165] : memref<2x2x512xf32, #tpu.memory_space<vmem>>, vector<1x2x256xf32>
    %386 = vector.shape_cast %385 : vector<1x2x256xf32> to vector<2x256xf32>
    %387 = vector.broadcast %89 : f32 to vector<2x256xf32>
    %388 = arith.mulf %387, %386 : vector<2x256xf32>
    %389 = arith.addf %384, %388 : vector<2x256xf32>
    %c1_166 = arith.constant 1 : index
    %c0_167 = arith.constant 0 : index
    %c112_168 = arith.constant 112 : index
    %390 = vector.load %arg5[%c1_166, %c0_167, %c112_168] : memref<2x2x512xf32, #tpu.memory_space<vmem>>, vector<1x2x256xf32>
    %391 = vector.shape_cast %390 : vector<1x2x256xf32> to vector<2x256xf32>
    %392 = vector.broadcast %96 : f32 to vector<2x256xf32>
    %393 = arith.mulf %392, %391 : vector<2x256xf32>
    %394 = arith.addf %389, %393 : vector<2x256xf32>
    %c1_169 = arith.constant 1 : index
    %c0_170 = arith.constant 0 : index
    %c128_171 = arith.constant 128 : index
    %395 = vector.load %arg5[%c1_169, %c0_170, %c128_171] : memref<2x2x512xf32, #tpu.memory_space<vmem>>, vector<1x2x256xf32>
    %396 = vector.shape_cast %395 : vector<1x2x256xf32> to vector<2x256xf32>
    %397 = vector.broadcast %103 : f32 to vector<2x256xf32>
    %398 = arith.mulf %397, %396 : vector<2x256xf32>
    %399 = arith.addf %394, %398 : vector<2x256xf32>
    %c1_172 = arith.constant 1 : index
    %c0_173 = arith.constant 0 : index
    %c144_174 = arith.constant 144 : index
    %400 = vector.load %arg5[%c1_172, %c0_173, %c144_174] : memref<2x2x512xf32, #tpu.memory_space<vmem>>, vector<1x2x256xf32>
    %401 = vector.shape_cast %400 : vector<1x2x256xf32> to vector<2x256xf32>
    %402 = vector.broadcast %110 : f32 to vector<2x256xf32>
    %403 = arith.mulf %402, %401 : vector<2x256xf32>
    %404 = arith.addf %399, %403 : vector<2x256xf32>
    %c1_175 = arith.constant 1 : index
    %c0_176 = arith.constant 0 : index
    %c160_177 = arith.constant 160 : index
    %405 = vector.load %arg5[%c1_175, %c0_176, %c160_177] : memref<2x2x512xf32, #tpu.memory_space<vmem>>, vector<1x2x256xf32>
    %406 = vector.shape_cast %405 : vector<1x2x256xf32> to vector<2x256xf32>
    %407 = vector.broadcast %117 : f32 to vector<2x256xf32>
    %408 = arith.mulf %407, %406 : vector<2x256xf32>
    %409 = arith.addf %404, %408 : vector<2x256xf32>
    %c1_178 = arith.constant 1 : index
    %c0_179 = arith.constant 0 : index
    %c176_180 = arith.constant 176 : index
    %410 = vector.load %arg5[%c1_178, %c0_179, %c176_180] : memref<2x2x512xf32, #tpu.memory_space<vmem>>, vector<1x2x256xf32>
    %411 = vector.shape_cast %410 : vector<1x2x256xf32> to vector<2x256xf32>
    %412 = vector.broadcast %124 : f32 to vector<2x256xf32>
    %413 = arith.mulf %412, %411 : vector<2x256xf32>
    %414 = arith.addf %409, %413 : vector<2x256xf32>
    %c3_181 = arith.constant 3 : index
    %c0_182 = arith.constant 0 : index
    %415 = vector.load %arg2[%c3_181, %c0_182] : memref<7x256xf32, #tpu.memory_space<vmem>>, vector<1x256xf32>
    %416 = vector.broadcast %415 : vector<1x256xf32> to vector<2x256xf32>
    %417 = arith.mulf %416, %414 : vector<2x256xf32>
    %418 = arith.addf %345, %417 : vector<2x256xf32>
    %c0_183 = arith.constant 0 : index
    %c0_184 = arith.constant 0 : index
    %c81_185 = arith.constant 81 : index
    %419 = vector.load %arg5[%c0_183, %c0_184, %c81_185] : memref<2x2x512xf32, #tpu.memory_space<vmem>>, vector<1x2x256xf32>
    %420 = vector.shape_cast %419 : vector<1x2x256xf32> to vector<2x256xf32>
    %421 = vector.broadcast %34 : f32 to vector<2x256xf32>
    %422 = arith.mulf %421, %420 : vector<2x256xf32>
    %c0_186 = arith.constant 0 : index
    %c0_187 = arith.constant 0 : index
    %c97_188 = arith.constant 97 : index
    %423 = vector.load %arg5[%c0_186, %c0_187, %c97_188] : memref<2x2x512xf32, #tpu.memory_space<vmem>>, vector<1x2x256xf32>
    %424 = vector.shape_cast %423 : vector<1x2x256xf32> to vector<2x256xf32>
    %425 = vector.broadcast %41 : f32 to vector<2x256xf32>
    %426 = arith.mulf %425, %424 : vector<2x256xf32>
    %427 = arith.addf %422, %426 : vector<2x256xf32>
    %c0_189 = arith.constant 0 : index
    %c0_190 = arith.constant 0 : index
    %c113 = arith.constant 113 : index
    %428 = vector.load %arg5[%c0_189, %c0_190, %c113] : memref<2x2x512xf32, #tpu.memory_space<vmem>>, vector<1x2x256xf32>
    %429 = vector.shape_cast %428 : vector<1x2x256xf32> to vector<2x256xf32>
    %430 = vector.broadcast %48 : f32 to vector<2x256xf32>
    %431 = arith.mulf %430, %429 : vector<2x256xf32>
    %432 = arith.addf %427, %431 : vector<2x256xf32>
    %c0_191 = arith.constant 0 : index
    %c0_192 = arith.constant 0 : index
    %c129 = arith.constant 129 : index
    %433 = vector.load %arg5[%c0_191, %c0_192, %c129] : memref<2x2x512xf32, #tpu.memory_space<vmem>>, vector<1x2x256xf32>
    %434 = vector.shape_cast %433 : vector<1x2x256xf32> to vector<2x256xf32>
    %435 = vector.broadcast %55 : f32 to vector<2x256xf32>
    %436 = arith.mulf %435, %434 : vector<2x256xf32>
    %437 = arith.addf %432, %436 : vector<2x256xf32>
    %c0_193 = arith.constant 0 : index
    %c0_194 = arith.constant 0 : index
    %c145 = arith.constant 145 : index
    %438 = vector.load %arg5[%c0_193, %c0_194, %c145] : memref<2x2x512xf32, #tpu.memory_space<vmem>>, vector<1x2x256xf32>
    %439 = vector.shape_cast %438 : vector<1x2x256xf32> to vector<2x256xf32>
    %440 = vector.broadcast %62 : f32 to vector<2x256xf32>
    %441 = arith.mulf %440, %439 : vector<2x256xf32>
    %442 = arith.addf %437, %441 : vector<2x256xf32>
    %c0_195 = arith.constant 0 : index
    %c0_196 = arith.constant 0 : index
    %c161 = arith.constant 161 : index
    %443 = vector.load %arg5[%c0_195, %c0_196, %c161] : memref<2x2x512xf32, #tpu.memory_space<vmem>>, vector<1x2x256xf32>
    %444 = vector.shape_cast %443 : vector<1x2x256xf32> to vector<2x256xf32>
    %445 = vector.broadcast %69 : f32 to vector<2x256xf32>
    %446 = arith.mulf %445, %444 : vector<2x256xf32>
    %447 = arith.addf %442, %446 : vector<2x256xf32>
    %c0_197 = arith.constant 0 : index
    %c0_198 = arith.constant 0 : index
    %c177 = arith.constant 177 : index
    %448 = vector.load %arg5[%c0_197, %c0_198, %c177] : memref<2x2x512xf32, #tpu.memory_space<vmem>>, vector<1x2x256xf32>
    %449 = vector.shape_cast %448 : vector<1x2x256xf32> to vector<2x256xf32>
    %450 = vector.broadcast %76 : f32 to vector<2x256xf32>
    %451 = arith.mulf %450, %449 : vector<2x256xf32>
    %452 = arith.addf %447, %451 : vector<2x256xf32>
    %c1_199 = arith.constant 1 : index
    %c0_200 = arith.constant 0 : index
    %c81_201 = arith.constant 81 : index
    %453 = vector.load %arg5[%c1_199, %c0_200, %c81_201] : memref<2x2x512xf32, #tpu.memory_space<vmem>>, vector<1x2x256xf32>
    %454 = vector.shape_cast %453 : vector<1x2x256xf32> to vector<2x256xf32>
    %455 = vector.broadcast %83 : f32 to vector<2x256xf32>
    %456 = arith.mulf %455, %454 : vector<2x256xf32>
    %457 = arith.addf %452, %456 : vector<2x256xf32>
    %c1_202 = arith.constant 1 : index
    %c0_203 = arith.constant 0 : index
    %c97_204 = arith.constant 97 : index
    %458 = vector.load %arg5[%c1_202, %c0_203, %c97_204] : memref<2x2x512xf32, #tpu.memory_space<vmem>>, vector<1x2x256xf32>
    %459 = vector.shape_cast %458 : vector<1x2x256xf32> to vector<2x256xf32>
    %460 = vector.broadcast %90 : f32 to vector<2x256xf32>
    %461 = arith.mulf %460, %459 : vector<2x256xf32>
    %462 = arith.addf %457, %461 : vector<2x256xf32>
    %c1_205 = arith.constant 1 : index
    %c0_206 = arith.constant 0 : index
    %c113_207 = arith.constant 113 : index
    %463 = vector.load %arg5[%c1_205, %c0_206, %c113_207] : memref<2x2x512xf32, #tpu.memory_space<vmem>>, vector<1x2x256xf32>
    %464 = vector.shape_cast %463 : vector<1x2x256xf32> to vector<2x256xf32>
    %465 = vector.broadcast %97 : f32 to vector<2x256xf32>
    %466 = arith.mulf %465, %464 : vector<2x256xf32>
    %467 = arith.addf %462, %466 : vector<2x256xf32>
    %c1_208 = arith.constant 1 : index
    %c0_209 = arith.constant 0 : index
    %c129_210 = arith.constant 129 : index
    %468 = vector.load %arg5[%c1_208, %c0_209, %c129_210] : memref<2x2x512xf32, #tpu.memory_space<vmem>>, vector<1x2x256xf32>
    %469 = vector.shape_cast %468 : vector<1x2x256xf32> to vector<2x256xf32>
    %470 = vector.broadcast %104 : f32 to vector<2x256xf32>
    %471 = arith.mulf %470, %469 : vector<2x256xf32>
    %472 = arith.addf %467, %471 : vector<2x256xf32>
    %c1_211 = arith.constant 1 : index
    %c0_212 = arith.constant 0 : index
    %c145_213 = arith.constant 145 : index
    %473 = vector.load %arg5[%c1_211, %c0_212, %c145_213] : memref<2x2x512xf32, #tpu.memory_space<vmem>>, vector<1x2x256xf32>
    %474 = vector.shape_cast %473 : vector<1x2x256xf32> to vector<2x256xf32>
    %475 = vector.broadcast %111 : f32 to vector<2x256xf32>
    %476 = arith.mulf %475, %474 : vector<2x256xf32>
    %477 = arith.addf %472, %476 : vector<2x256xf32>
    %c1_214 = arith.constant 1 : index
    %c0_215 = arith.constant 0 : index
    %c161_216 = arith.constant 161 : index
    %478 = vector.load %arg5[%c1_214, %c0_215, %c161_216] : memref<2x2x512xf32, #tpu.memory_space<vmem>>, vector<1x2x256xf32>
    %479 = vector.shape_cast %478 : vector<1x2x256xf32> to vector<2x256xf32>
    %480 = vector.broadcast %118 : f32 to vector<2x256xf32>
    %481 = arith.mulf %480, %479 : vector<2x256xf32>
    %482 = arith.addf %477, %481 : vector<2x256xf32>
    %c1_217 = arith.constant 1 : index
    %c0_218 = arith.constant 0 : index
    %c177_219 = arith.constant 177 : index
    %483 = vector.load %arg5[%c1_217, %c0_218, %c177_219] : memref<2x2x512xf32, #tpu.memory_space<vmem>>, vector<1x2x256xf32>
    %484 = vector.shape_cast %483 : vector<1x2x256xf32> to vector<2x256xf32>
    %485 = vector.broadcast %125 : f32 to vector<2x256xf32>
    %486 = arith.mulf %485, %484 : vector<2x256xf32>
    %487 = arith.addf %482, %486 : vector<2x256xf32>
    %c4_220 = arith.constant 4 : index
    %c0_221 = arith.constant 0 : index
    %488 = vector.load %arg2[%c4_220, %c0_221] : memref<7x256xf32, #tpu.memory_space<vmem>>, vector<1x256xf32>
    %489 = vector.broadcast %488 : vector<1x256xf32> to vector<2x256xf32>
    %490 = arith.mulf %489, %487 : vector<2x256xf32>
    %491 = arith.addf %418, %490 : vector<2x256xf32>
    %c0_222 = arith.constant 0 : index
    %c0_223 = arith.constant 0 : index
    %c82_224 = arith.constant 82 : index
    %492 = vector.load %arg5[%c0_222, %c0_223, %c82_224] : memref<2x2x512xf32, #tpu.memory_space<vmem>>, vector<1x2x256xf32>
    %493 = vector.shape_cast %492 : vector<1x2x256xf32> to vector<2x256xf32>
    %494 = vector.broadcast %35 : f32 to vector<2x256xf32>
    %495 = arith.mulf %494, %493 : vector<2x256xf32>
    %c0_225 = arith.constant 0 : index
    %c0_226 = arith.constant 0 : index
    %c98 = arith.constant 98 : index
    %496 = vector.load %arg5[%c0_225, %c0_226, %c98] : memref<2x2x512xf32, #tpu.memory_space<vmem>>, vector<1x2x256xf32>
    %497 = vector.shape_cast %496 : vector<1x2x256xf32> to vector<2x256xf32>
    %498 = vector.broadcast %42 : f32 to vector<2x256xf32>
    %499 = arith.mulf %498, %497 : vector<2x256xf32>
    %500 = arith.addf %495, %499 : vector<2x256xf32>
    %c0_227 = arith.constant 0 : index
    %c0_228 = arith.constant 0 : index
    %c114 = arith.constant 114 : index
    %501 = vector.load %arg5[%c0_227, %c0_228, %c114] : memref<2x2x512xf32, #tpu.memory_space<vmem>>, vector<1x2x256xf32>
    %502 = vector.shape_cast %501 : vector<1x2x256xf32> to vector<2x256xf32>
    %503 = vector.broadcast %49 : f32 to vector<2x256xf32>
    %504 = arith.mulf %503, %502 : vector<2x256xf32>
    %505 = arith.addf %500, %504 : vector<2x256xf32>
    %c0_229 = arith.constant 0 : index
    %c0_230 = arith.constant 0 : index
    %c130 = arith.constant 130 : index
    %506 = vector.load %arg5[%c0_229, %c0_230, %c130] : memref<2x2x512xf32, #tpu.memory_space<vmem>>, vector<1x2x256xf32>
    %507 = vector.shape_cast %506 : vector<1x2x256xf32> to vector<2x256xf32>
    %508 = vector.broadcast %56 : f32 to vector<2x256xf32>
    %509 = arith.mulf %508, %507 : vector<2x256xf32>
    %510 = arith.addf %505, %509 : vector<2x256xf32>
    %c0_231 = arith.constant 0 : index
    %c0_232 = arith.constant 0 : index
    %c146 = arith.constant 146 : index
    %511 = vector.load %arg5[%c0_231, %c0_232, %c146] : memref<2x2x512xf32, #tpu.memory_space<vmem>>, vector<1x2x256xf32>
    %512 = vector.shape_cast %511 : vector<1x2x256xf32> to vector<2x256xf32>
    %513 = vector.broadcast %63 : f32 to vector<2x256xf32>
    %514 = arith.mulf %513, %512 : vector<2x256xf32>
    %515 = arith.addf %510, %514 : vector<2x256xf32>
    %c0_233 = arith.constant 0 : index
    %c0_234 = arith.constant 0 : index
    %c162 = arith.constant 162 : index
    %516 = vector.load %arg5[%c0_233, %c0_234, %c162] : memref<2x2x512xf32, #tpu.memory_space<vmem>>, vector<1x2x256xf32>
    %517 = vector.shape_cast %516 : vector<1x2x256xf32> to vector<2x256xf32>
    %518 = vector.broadcast %70 : f32 to vector<2x256xf32>
    %519 = arith.mulf %518, %517 : vector<2x256xf32>
    %520 = arith.addf %515, %519 : vector<2x256xf32>
    %c0_235 = arith.constant 0 : index
    %c0_236 = arith.constant 0 : index
    %c178 = arith.constant 178 : index
    %521 = vector.load %arg5[%c0_235, %c0_236, %c178] : memref<2x2x512xf32, #tpu.memory_space<vmem>>, vector<1x2x256xf32>
    %522 = vector.shape_cast %521 : vector<1x2x256xf32> to vector<2x256xf32>
    %523 = vector.broadcast %77 : f32 to vector<2x256xf32>
    %524 = arith.mulf %523, %522 : vector<2x256xf32>
    %525 = arith.addf %520, %524 : vector<2x256xf32>
    %c1_237 = arith.constant 1 : index
    %c0_238 = arith.constant 0 : index
    %c82_239 = arith.constant 82 : index
    %526 = vector.load %arg5[%c1_237, %c0_238, %c82_239] : memref<2x2x512xf32, #tpu.memory_space<vmem>>, vector<1x2x256xf32>
    %527 = vector.shape_cast %526 : vector<1x2x256xf32> to vector<2x256xf32>
    %528 = vector.broadcast %84 : f32 to vector<2x256xf32>
    %529 = arith.mulf %528, %527 : vector<2x256xf32>
    %530 = arith.addf %525, %529 : vector<2x256xf32>
    %c1_240 = arith.constant 1 : index
    %c0_241 = arith.constant 0 : index
    %c98_242 = arith.constant 98 : index
    %531 = vector.load %arg5[%c1_240, %c0_241, %c98_242] : memref<2x2x512xf32, #tpu.memory_space<vmem>>, vector<1x2x256xf32>
    %532 = vector.shape_cast %531 : vector<1x2x256xf32> to vector<2x256xf32>
    %533 = vector.broadcast %91 : f32 to vector<2x256xf32>
    %534 = arith.mulf %533, %532 : vector<2x256xf32>
    %535 = arith.addf %530, %534 : vector<2x256xf32>
    %c1_243 = arith.constant 1 : index
    %c0_244 = arith.constant 0 : index
    %c114_245 = arith.constant 114 : index
    %536 = vector.load %arg5[%c1_243, %c0_244, %c114_245] : memref<2x2x512xf32, #tpu.memory_space<vmem>>, vector<1x2x256xf32>
    %537 = vector.shape_cast %536 : vector<1x2x256xf32> to vector<2x256xf32>
    %538 = vector.broadcast %98 : f32 to vector<2x256xf32>
    %539 = arith.mulf %538, %537 : vector<2x256xf32>
    %540 = arith.addf %535, %539 : vector<2x256xf32>
    %c1_246 = arith.constant 1 : index
    %c0_247 = arith.constant 0 : index
    %c130_248 = arith.constant 130 : index
    %541 = vector.load %arg5[%c1_246, %c0_247, %c130_248] : memref<2x2x512xf32, #tpu.memory_space<vmem>>, vector<1x2x256xf32>
    %542 = vector.shape_cast %541 : vector<1x2x256xf32> to vector<2x256xf32>
    %543 = vector.broadcast %105 : f32 to vector<2x256xf32>
    %544 = arith.mulf %543, %542 : vector<2x256xf32>
    %545 = arith.addf %540, %544 : vector<2x256xf32>
    %c1_249 = arith.constant 1 : index
    %c0_250 = arith.constant 0 : index
    %c146_251 = arith.constant 146 : index
    %546 = vector.load %arg5[%c1_249, %c0_250, %c146_251] : memref<2x2x512xf32, #tpu.memory_space<vmem>>, vector<1x2x256xf32>
    %547 = vector.shape_cast %546 : vector<1x2x256xf32> to vector<2x256xf32>
    %548 = vector.broadcast %112 : f32 to vector<2x256xf32>
    %549 = arith.mulf %548, %547 : vector<2x256xf32>
    %550 = arith.addf %545, %549 : vector<2x256xf32>
    %c1_252 = arith.constant 1 : index
    %c0_253 = arith.constant 0 : index
    %c162_254 = arith.constant 162 : index
    %551 = vector.load %arg5[%c1_252, %c0_253, %c162_254] : memref<2x2x512xf32, #tpu.memory_space<vmem>>, vector<1x2x256xf32>
    %552 = vector.shape_cast %551 : vector<1x2x256xf32> to vector<2x256xf32>
    %553 = vector.broadcast %119 : f32 to vector<2x256xf32>
    %554 = arith.mulf %553, %552 : vector<2x256xf32>
    %555 = arith.addf %550, %554 : vector<2x256xf32>
    %c1_255 = arith.constant 1 : index
    %c0_256 = arith.constant 0 : index
    %c178_257 = arith.constant 178 : index
    %556 = vector.load %arg5[%c1_255, %c0_256, %c178_257] : memref<2x2x512xf32, #tpu.memory_space<vmem>>, vector<1x2x256xf32>
    %557 = vector.shape_cast %556 : vector<1x2x256xf32> to vector<2x256xf32>
    %558 = vector.broadcast %126 : f32 to vector<2x256xf32>
    %559 = arith.mulf %558, %557 : vector<2x256xf32>
    %560 = arith.addf %555, %559 : vector<2x256xf32>
    %c5_258 = arith.constant 5 : index
    %c0_259 = arith.constant 0 : index
    %561 = vector.load %arg2[%c5_258, %c0_259] : memref<7x256xf32, #tpu.memory_space<vmem>>, vector<1x256xf32>
    %562 = vector.broadcast %561 : vector<1x256xf32> to vector<2x256xf32>
    %563 = arith.mulf %562, %560 : vector<2x256xf32>
    %564 = arith.addf %491, %563 : vector<2x256xf32>
    %c0_260 = arith.constant 0 : index
    %c0_261 = arith.constant 0 : index
    %c83_262 = arith.constant 83 : index
    %565 = vector.load %arg5[%c0_260, %c0_261, %c83_262] : memref<2x2x512xf32, #tpu.memory_space<vmem>>, vector<1x2x256xf32>
    %566 = vector.shape_cast %565 : vector<1x2x256xf32> to vector<2x256xf32>
    %567 = vector.broadcast %36 : f32 to vector<2x256xf32>
    %568 = arith.mulf %567, %566 : vector<2x256xf32>
    %c0_263 = arith.constant 0 : index
    %c0_264 = arith.constant 0 : index
    %c99 = arith.constant 99 : index
    %569 = vector.load %arg5[%c0_263, %c0_264, %c99] : memref<2x2x512xf32, #tpu.memory_space<vmem>>, vector<1x2x256xf32>
    %570 = vector.shape_cast %569 : vector<1x2x256xf32> to vector<2x256xf32>
    %571 = vector.broadcast %43 : f32 to vector<2x256xf32>
    %572 = arith.mulf %571, %570 : vector<2x256xf32>
    %573 = arith.addf %568, %572 : vector<2x256xf32>
    %c0_265 = arith.constant 0 : index
    %c0_266 = arith.constant 0 : index
    %c115 = arith.constant 115 : index
    %574 = vector.load %arg5[%c0_265, %c0_266, %c115] : memref<2x2x512xf32, #tpu.memory_space<vmem>>, vector<1x2x256xf32>
    %575 = vector.shape_cast %574 : vector<1x2x256xf32> to vector<2x256xf32>
    %576 = vector.broadcast %50 : f32 to vector<2x256xf32>
    %577 = arith.mulf %576, %575 : vector<2x256xf32>
    %578 = arith.addf %573, %577 : vector<2x256xf32>
    %c0_267 = arith.constant 0 : index
    %c0_268 = arith.constant 0 : index
    %c131 = arith.constant 131 : index
    %579 = vector.load %arg5[%c0_267, %c0_268, %c131] : memref<2x2x512xf32, #tpu.memory_space<vmem>>, vector<1x2x256xf32>
    %580 = vector.shape_cast %579 : vector<1x2x256xf32> to vector<2x256xf32>
    %581 = vector.broadcast %57 : f32 to vector<2x256xf32>
    %582 = arith.mulf %581, %580 : vector<2x256xf32>
    %583 = arith.addf %578, %582 : vector<2x256xf32>
    %c0_269 = arith.constant 0 : index
    %c0_270 = arith.constant 0 : index
    %c147 = arith.constant 147 : index
    %584 = vector.load %arg5[%c0_269, %c0_270, %c147] : memref<2x2x512xf32, #tpu.memory_space<vmem>>, vector<1x2x256xf32>
    %585 = vector.shape_cast %584 : vector<1x2x256xf32> to vector<2x256xf32>
    %586 = vector.broadcast %64 : f32 to vector<2x256xf32>
    %587 = arith.mulf %586, %585 : vector<2x256xf32>
    %588 = arith.addf %583, %587 : vector<2x256xf32>
    %c0_271 = arith.constant 0 : index
    %c0_272 = arith.constant 0 : index
    %c163 = arith.constant 163 : index
    %589 = vector.load %arg5[%c0_271, %c0_272, %c163] : memref<2x2x512xf32, #tpu.memory_space<vmem>>, vector<1x2x256xf32>
    %590 = vector.shape_cast %589 : vector<1x2x256xf32> to vector<2x256xf32>
    %591 = vector.broadcast %71 : f32 to vector<2x256xf32>
    %592 = arith.mulf %591, %590 : vector<2x256xf32>
    %593 = arith.addf %588, %592 : vector<2x256xf32>
    %c0_273 = arith.constant 0 : index
    %c0_274 = arith.constant 0 : index
    %c179 = arith.constant 179 : index
    %594 = vector.load %arg5[%c0_273, %c0_274, %c179] : memref<2x2x512xf32, #tpu.memory_space<vmem>>, vector<1x2x256xf32>
    %595 = vector.shape_cast %594 : vector<1x2x256xf32> to vector<2x256xf32>
    %596 = vector.broadcast %78 : f32 to vector<2x256xf32>
    %597 = arith.mulf %596, %595 : vector<2x256xf32>
    %598 = arith.addf %593, %597 : vector<2x256xf32>
    %c1_275 = arith.constant 1 : index
    %c0_276 = arith.constant 0 : index
    %c83_277 = arith.constant 83 : index
    %599 = vector.load %arg5[%c1_275, %c0_276, %c83_277] : memref<2x2x512xf32, #tpu.memory_space<vmem>>, vector<1x2x256xf32>
    %600 = vector.shape_cast %599 : vector<1x2x256xf32> to vector<2x256xf32>
    %601 = vector.broadcast %85 : f32 to vector<2x256xf32>
    %602 = arith.mulf %601, %600 : vector<2x256xf32>
    %603 = arith.addf %598, %602 : vector<2x256xf32>
    %c1_278 = arith.constant 1 : index
    %c0_279 = arith.constant 0 : index
    %c99_280 = arith.constant 99 : index
    %604 = vector.load %arg5[%c1_278, %c0_279, %c99_280] : memref<2x2x512xf32, #tpu.memory_space<vmem>>, vector<1x2x256xf32>
    %605 = vector.shape_cast %604 : vector<1x2x256xf32> to vector<2x256xf32>
    %606 = vector.broadcast %92 : f32 to vector<2x256xf32>
    %607 = arith.mulf %606, %605 : vector<2x256xf32>
    %608 = arith.addf %603, %607 : vector<2x256xf32>
    %c1_281 = arith.constant 1 : index
    %c0_282 = arith.constant 0 : index
    %c115_283 = arith.constant 115 : index
    %609 = vector.load %arg5[%c1_281, %c0_282, %c115_283] : memref<2x2x512xf32, #tpu.memory_space<vmem>>, vector<1x2x256xf32>
    %610 = vector.shape_cast %609 : vector<1x2x256xf32> to vector<2x256xf32>
    %611 = vector.broadcast %99 : f32 to vector<2x256xf32>
    %612 = arith.mulf %611, %610 : vector<2x256xf32>
    %613 = arith.addf %608, %612 : vector<2x256xf32>
    %c1_284 = arith.constant 1 : index
    %c0_285 = arith.constant 0 : index
    %c131_286 = arith.constant 131 : index
    %614 = vector.load %arg5[%c1_284, %c0_285, %c131_286] : memref<2x2x512xf32, #tpu.memory_space<vmem>>, vector<1x2x256xf32>
    %615 = vector.shape_cast %614 : vector<1x2x256xf32> to vector<2x256xf32>
    %616 = vector.broadcast %106 : f32 to vector<2x256xf32>
    %617 = arith.mulf %616, %615 : vector<2x256xf32>
    %618 = arith.addf %613, %617 : vector<2x256xf32>
    %c1_287 = arith.constant 1 : index
    %c0_288 = arith.constant 0 : index
    %c147_289 = arith.constant 147 : index
    %619 = vector.load %arg5[%c1_287, %c0_288, %c147_289] : memref<2x2x512xf32, #tpu.memory_space<vmem>>, vector<1x2x256xf32>
    %620 = vector.shape_cast %619 : vector<1x2x256xf32> to vector<2x256xf32>
    %621 = vector.broadcast %113 : f32 to vector<2x256xf32>
    %622 = arith.mulf %621, %620 : vector<2x256xf32>
    %623 = arith.addf %618, %622 : vector<2x256xf32>
    %c1_290 = arith.constant 1 : index
    %c0_291 = arith.constant 0 : index
    %c163_292 = arith.constant 163 : index
    %624 = vector.load %arg5[%c1_290, %c0_291, %c163_292] : memref<2x2x512xf32, #tpu.memory_space<vmem>>, vector<1x2x256xf32>
    %625 = vector.shape_cast %624 : vector<1x2x256xf32> to vector<2x256xf32>
    %626 = vector.broadcast %120 : f32 to vector<2x256xf32>
    %627 = arith.mulf %626, %625 : vector<2x256xf32>
    %628 = arith.addf %623, %627 : vector<2x256xf32>
    %c1_293 = arith.constant 1 : index
    %c0_294 = arith.constant 0 : index
    %c179_295 = arith.constant 179 : index
    %629 = vector.load %arg5[%c1_293, %c0_294, %c179_295] : memref<2x2x512xf32, #tpu.memory_space<vmem>>, vector<1x2x256xf32>
    %630 = vector.shape_cast %629 : vector<1x2x256xf32> to vector<2x256xf32>
    %631 = vector.broadcast %127 : f32 to vector<2x256xf32>
    %632 = arith.mulf %631, %630 : vector<2x256xf32>
    %633 = arith.addf %628, %632 : vector<2x256xf32>
    %c6_296 = arith.constant 6 : index
    %c0_297 = arith.constant 0 : index
    %634 = vector.load %arg2[%c6_296, %c0_297] : memref<7x256xf32, #tpu.memory_space<vmem>>, vector<1x256xf32>
    %635 = vector.broadcast %634 : vector<1x256xf32> to vector<2x256xf32>
    %636 = arith.mulf %635, %633 : vector<2x256xf32>
    %637 = arith.addf %564, %636 : vector<2x256xf32>
    %638 = arith.negf %637 : vector<2x256xf32>
    %639 = math.exp %638 : vector<2x256xf32>
    %cst_298 = arith.constant 1.000000e+00 : f32
    %640 = vector.broadcast %cst_298 : f32 to vector<2x256xf32>
    %641 = arith.addf %640, %639 : vector<2x256xf32>
    %642 = arith.divf %640, %641 : vector<2x256xf32>
    %c0_299 = arith.constant 0 : index
    %c0_300 = arith.constant 0 : index
    %c0_301 = arith.constant 0 : index
    %643 = vector.load %arg4[%c0_299, %c0_300, %c0_301] : memref<1x2x256xf32, #tpu.memory_space<vmem>>, vector<1x2x256xf32>
    %644 = vector.shape_cast %643 : vector<1x2x256xf32> to vector<2x256xf32>
    %645 = vector.shape_cast %642 : vector<2x256xf32> to vector<1x2x256xf32>
    tpu.vector_store %arg4[%c0_299, %c0_300, %c0_301], %645 {strides = array<i32>} : memref<1x2x256xf32, #tpu.memory_space<vmem>>, vector<1x2x256xf32>,
    return
  }
  func.func @transform_0(%arg0: i32, %arg1: memref<98xf32, #tpu.memory_space<smem>>) -> (i32, i32) {
    %c0_i32 = arith.constant 0 : i32
    %c0_i32_0 = arith.constant 0 : i32
    %c0_i32_1 = arith.constant 0 : i32
    return %c0_i32, %c0_i32_0 : i32, i32
  }
  func.func @transform_1(%arg0: i32, %arg1: memref<98xf32, #tpu.memory_space<smem>>) -> (i32, i32, i32) {
    %c0_i32 = arith.constant 0 : i32
    %c0_i32_0 = arith.constant 0 : i32
    %c0_i32_1 = arith.constant 0 : i32
    return %arg0, %c0_i32, %c0_i32_0 : i32, i32, i32
  }
  func.func @transform_2(%arg0: i32, %arg1: memref<98xf32, #tpu.memory_space<smem>>) -> (i32, i32, i32) {
    %c0_i32 = arith.constant 0 : i32
    %c0_i32_0 = arith.constant 0 : i32
    %c0_i32_1 = arith.constant 0 : i32
    return %arg0, %c0_i32, %c0_i32_0 : i32, i32, i32
  }
}

</mosaic_0001>

<llo_original>
// kernel: tpu_custom_call.1
$region0: #{tpu_custom_call.1}
  #allocation0 [shape = 'u32[]', space=smem, size = 0x4, offset = 0x4, fixed_abs, tag = 'smem constant byte address 0x4 - core index']
  #allocation1 [shape = 'u32[144,128]{1,0:T(1,128)}', space=vmem, size = 0x12000, scoped, tag = 'internal scratch']
  #allocation2 [shape = 'f32[2,2,512]{2,1,0:T(2,128)}', space=vmem, size = 0x2000, scoped, tag = 'scratch operand']
  #allocation3 [shape = 's32[1]{0}', space=sflag, size = 0x4, scoped, tag = 'scoped memory for tpu_custom_call.1']
  #allocation4 [shape = 'u8[512]{0}', space=smem, size = 0x200, scoped, tag = 'prefetched SMEM operand 0']
  %s0 = inlined_call_operand.hbm [shape: f32[98], index: 0, kind: input, shape index: {}]
  %s1 = inlined_call_operand.hbm [shape: f32[7,256], index: 1, kind: input, shape index: {}]
  %s2 = inlined_call_operand.hbm [shape: f32[2,4,256], index: 2, kind: input, shape index: {}]
  %s3 = inlined_call_operand.hbm [shape: f32[1,2,256], index: 3, kind: output, shape index: {}]
  %s4 = sld [smem:[#allocation0]]
  $region26: #{tpu_custom_call.1} parent=0
    _
  %s6 = ssub.s32 1, %s4
  %s7 = scalar_select 0, %s6, %s4
  %9 = dma.hbm_to_smem %s0, 16, [#allocation4], [#allocation3]
  %10 = dma.done [#allocation3], 16
  %11 = sfence
  $region1: #{tpu_custom_call.1} parent=0
    #allocation5 [shape = 'u8[8192]{0}', space=vmem, size = 0x2000, scoped, tag = 'input window, operand 1, single buffered']
    #allocation6 [shape = 's32[1]{0}', space=sflag, size = 0x4, scoped, tag = 'scoped memory for tpu_custom_call.1']
    #allocation7 [shape = 's32[1]{0}', space=sflag, size = 0x4, scoped, tag = 'scoped memory for tpu_custom_call.1']
    #allocation8 [shape = 'u8[8192]{0}', space=vmem, size = 0x2000, scoped, tag = 'input window, operand 2, single buffered']
    #allocation9 [shape = 's32[1]{0}', space=sflag, size = 0x4, scoped, tag = 'scoped memory for tpu_custom_call.1']
    #allocation10 [shape = 'u8[2048]{0}', space=vmem, size = 0x800, scoped, tag = 'output window, operand 0, single buffered']
    %12 = vsyncpa [#allocation6], 0
    %13 = vsyncpa [#allocation9], 0
    %14 = vsyncpa [#allocation7], 0
    // Predicated region
    $region2: #{tpu_custom_call.1} parent=1 // pred_check
      _
    $region3: #{tpu_custom_call.1} parent=1 // pred_check_branch
      %16 = sbr.rel (0) target = $region5
    $region4: #{tpu_custom_call.1} parent=1 // pred_region
      %s18 = ssub.s32 256, 256
      %19 = vsyncadd [#allocation6], %s18
      %s21 = sshll.u32 [#allocation5], 4
      %s22 = int_to_ptr.vmem [resolvable:$true] %s21
      %24 = dma.hbm_to_vmem [thread:$0]  %s1, 256, %s22, [#allocation6]
    $region5: #{tpu_custom_call.1} parent=1 // pred_fallthru
      _
    // Predicated region
    $region6: #{tpu_custom_call.1} parent=1 // pred_check
      _
    $region7: #{tpu_custom_call.1} parent=1 // pred_check_branch
      %26 = sbr.rel (0) target = $region9
    $region8: #{tpu_custom_call.1} parent=1 // pred_region
      %s28 = ssub.s32 256, 256
      %29 = vsyncadd [#allocation9], %s28
      %s30 = sshll.u32 [#allocation8], 4
      %s31 = int_to_ptr.vmem [resolvable:$true] %s30
      %36 = dma.hbm_to_vmem [thread:$0]  %s2, 256, %s31, [#allocation9], 128, 128, 8
    $region9: #{tpu_custom_call.1} parent=1 // pred_fallthru
      _
    // Predicated region
    $region10: #{tpu_custom_call.1} parent=1 // pred_check
      _
    $region11: #{tpu_custom_call.1} parent=1 // pred_check_branch
      %38 = sbr.rel (0) target = $region13
    $region12: #{tpu_custom_call.1} parent=1 // pred_region
      %39 = dma.done [#allocation6], 256
    $region13: #{tpu_custom_call.1} parent=1 // pred_fallthru
      _
    // Predicated region
    $region14: #{tpu_custom_call.1} parent=1 // pred_check
      _
    $region15: #{tpu_custom_call.1} parent=1 // pred_check_branch
      %41 = sbr.rel (0) target = $region17
    $region16: #{tpu_custom_call.1} parent=1 // pred_region
      %42 = dma.done [#allocation9], 256
    $region17: #{tpu_custom_call.1} parent=1 // pred_fallthru
      _
    %43 = vst [vmem:[#allocation2] sm:$0xff] 0.0
    %44 = vst [vmem:[#allocation2 + $0x8] sm:$0xff] 0.0
    %v45 = vld [vmem:[#allocation8] sm:$0xff]
    %v47 = vcombine.high %v45, %v45
    %vm49 = vcmask 1043456
    %v50 = vsel %vm49, %v45, 0.0
    %v51 = vrot.slane %v50, 4
    %v52 = vadd.f32 %v50, %v51
    %v53 = vrot.slane %v52, 2
    %v54 = vadd.f32 %v52, %v53
    %v55 = vrot.slane %v54, 1
    %v56 = vadd.f32 %v54, %v55
    %v57 = vsel %vm49, %v47, 0.0
    %v58 = vrot.slane %v57, 4
    %v59 = vadd.f32 %v57, %v58
    %v60 = vrot.slane %v59, 2
    %v61 = vadd.f32 %v59, %v60
    %v62 = vrot.slane %v61, 1
    %v63 = vadd.f32 %v61, %v62
    %v64 = vmul.f32 %v56, 0.25
    %v65 = vmul.f32 %v63, 0.25
    %v66 = vsel %vm49, %v45, -inf
    %v67 = vrot.slane %v66, 4
    %v68 = vmax.f32 %v66, %v67
    %v69 = vrot.slane %v68, 2
    %v70 = vmax.f32 %v68, %v69
    %v71 = vrot.slane %v70, 1
    %v72 = vmax.f32 %v70, %v71
    %v73 = vsel %vm49, %v47, -inf
    %v74 = vrot.slane %v73, 4
    %v75 = vmax.f32 %v73, %v74
    %v76 = vrot.slane %v75, 2
    %v77 = vmax.f32 %v75, %v76
    %v78 = vrot.slane %v77, 1
    %v79 = vmax.f32 %v77, %v78
    %v82 = vcombine.low %v64, %v65
    %v84 = vunpack.c.l.s4 1966171168
    %v85 = vunpack.c.0.s8 %v84
    %v86 = vlaneseq
    %v87 = vshrl.u32 %v86, 7
    %v88 = vsub.s32 %v85, %v87
    %v89 = vrot.slane %v82, %v88
    %v91 = vunpack.c.l.s4 1966171168
    %v92 = vunpack.c.0.s8 %v91
    %v93 = vlaneseq
    %v94 = vshrl.u32 %v93, 7
    %v95 = vsub.s32 %v92, %v94
    %v96 = vrot.slane %v89, %v95
    %v98 = vlaneseq
    %vm99 = vcmp.ge.s32.totalorder %v98, 0
    %vm100 = vcmp.lt.s32.totalorder %v98, 256
    %vm101 = vmand %vm99, %vm100
    %s102 = scalar_lea.vmem [#allocation2], 2
    %103 = vst.msk [vmem:[%s102] ss:$2 sm:$0x3] %vm101, %v96
    %v106 = vcombine.low %v72, %v79
    %v108 = vunpack.c.l.s4 1966171168
    %v109 = vunpack.c.0.s8 %v108
    %v110 = vlaneseq
    %v111 = vshrl.u32 %v110, 7
    %v112 = vsub.s32 %v109, %v111
    %v113 = vrot.slane %v106, %v112
    %v115 = vunpack.c.l.s4 1966171168
    %v116 = vunpack.c.0.s8 %v115
    %v117 = vlaneseq
    %v118 = vshrl.u32 %v117, 7
    %v119 = vsub.s32 %v116, %v118
    %v120 = vrot.slane %v113, %v119
    %s122 = scalar_lea.vmem [#allocation2], 8
    %s123 = scalar_lea.vmem %s122, 2 [#allocation2]
    %124 = vst.msk [vmem:[%s123] ss:$2 sm:$0x3] %vm101, %v120
    %s125 = scalar_lea.vmem [#allocation8], 8
    %v126 = vld [vmem:[%s125] sm:$0xff]
    %v128 = vcombine.high %v126, %v126
    %v130 = vsel %vm49, %v126, 0.0
    %v131 = vrot.slane %v130, 4
    %v132 = vadd.f32 %v130, %v131
    %v133 = vrot.slane %v132, 2
    %v134 = vadd.f32 %v132, %v133
    %v135 = vrot.slane %v134, 1
    %v136 = vadd.f32 %v134, %v135
    %v137 = vsel %vm49, %v128, 0.0
    %v138 = vrot.slane %v137, 4
    %v139 = vadd.f32 %v137, %v138
    %v140 = vrot.slane %v139, 2
    %v141 = vadd.f32 %v139, %v140
    %v142 = vrot.slane %v141, 1
    %v143 = vadd.f32 %v141, %v142
    %v144 = vmul.f32 %v136, 0.25
    %v145 = vmul.f32 %v143, 0.25
    %v146 = vsel %vm49, %v126, -inf
    %v147 = vrot.slane %v146, 4
    %v148 = vmax.f32 %v146, %v147
    %v149 = vrot.slane %v148, 2
    %v150 = vmax.f32 %v148, %v149
    %v151 = vrot.slane %v150, 1
    %v152 = vmax.f32 %v150, %v151
    %v153 = vsel %vm49, %v128, -inf
    %v154 = vrot.slane %v153, 4
    %v155 = vmax.f32 %v153, %v154
    %v156 = vrot.slane %v155, 2
    %v157 = vmax.f32 %v155, %v156
    %v158 = vrot.slane %v157, 1
    %v159 = vmax.f32 %v157, %v158
    %v162 = vcombine.low %v144, %v145
    %v164 = vunpack.c.l.s4 1966171168
    %v165 = vunpack.c.0.s8 %v164
    %v166 = vlaneseq
    %v167 = vshrl.u32 %v166, 7
    %v168 = vsub.s32 %v165, %v167
    %v169 = vrot.slane %v162, %v168
    %v171 = vunpack.c.l.s4 1966171168
    %v172 = vunpack.c.0.s8 %v171
    %v173 = vlaneseq
    %v174 = vshrl.u32 %v173, 7
    %v175 = vsub.s32 %v172, %v174
    %v176 = vrot.slane %v169, %v175
    %s178 = scalar_lea.vmem [#allocation2], 3
    %179 = vst.msk [vmem:[%s178] ss:$2 sm:$0x3] %vm101, %v176
    %v182 = vcombine.low %v152, %v159
    %v184 = vunpack.c.l.s4 1966171168
    %v185 = vunpack.c.0.s8 %v184
    %v186 = vlaneseq
    %v187 = vshrl.u32 %v186, 7
    %v188 = vsub.s32 %v185, %v187
    %v189 = vrot.slane %v182, %v188
    %v191 = vunpack.c.l.s4 1966171168
    %v192 = vunpack.c.0.s8 %v191
    %v193 = vlaneseq
    %v194 = vshrl.u32 %v193, 7
    %v195 = vsub.s32 %v192, %v194
    %v196 = vrot.slane %v189, %v195
    %s198 = scalar_lea.vmem %s122, 3 [#allocation2]
    %199 = vst.msk [vmem:[%s198] ss:$2 sm:$0x3] %vm101, %v196
    %s200 = sld [smem:[#allocation4]]
    %s201 = sld [smem:[#allocation4 + $0x1]]
    %s202 = sld [smem:[#allocation4 + $0x2]]
    %s203 = sld [smem:[#allocation4 + $0x3]]
    %s204 = sld [smem:[#allocation4 + $0x4]]
    %s205 = sld [smem:[#allocation4 + $0x5]]
    %s206 = sld [smem:[#allocation4 + $0x6]]
    %s207 = sld [smem:[#allocation4 + $0x7]]
    %s208 = sld [smem:[#allocation4 + $0x8]]
    %s209 = sld [smem:[#allocation4 + $0x9]]
    %s210 = sld [smem:[#allocation4 + $0xa]]
    %s211 = sld [smem:[#allocation4 + $0xb]]
    %s212 = sld [smem:[#allocation4 + $0xc]]
    %s213 = sld [smem:[#allocation4 + $0xd]]
    %s214 = sld [smem:[#allocation4 + $0xe]]
    %s215 = sld [smem:[#allocation4 + $0xf]]
    %s216 = sld [smem:[#allocation4 + $0x10]]
    %s217 = sld [smem:[#allocation4 + $0x11]]
    %s218 = sld [smem:[#allocation4 + $0x12]]
    %s219 = sld [smem:[#allocation4 + $0x13]]
    %s220 = sld [smem:[#allocation4 + $0x14]]
    %s221 = sld [smem:[#allocation4 + $0x15]]
    %s222 = sld [smem:[#allocation4 + $0x16]]
    %s223 = sld [smem:[#allocation4 + $0x17]]
    %s224 = sld [smem:[#allocation4 + $0x18]]
    %s225 = sld [smem:[#allocation4 + $0x19]]
    %s226 = sld [smem:[#allocation4 + $0x1a]]
    %s227 = sld [smem:[#allocation4 + $0x1b]]
    %s228 = sld [smem:[#allocation4 + $0x1c]]
    %s229 = sld [smem:[#allocation4 + $0x1d]]
    %s230 = sld [smem:[#allocation4 + $0x1e]]
    %s231 = sld [smem:[#allocation4 + $0x1f]]
    %s232 = sld [smem:[#allocation4 + $0x20]]
    %s233 = sld [smem:[#allocation4 + $0x21]]
    %s234 = sld [smem:[#allocation4 + $0x22]]
    %s235 = sld [smem:[#allocation4 + $0x23]]
    %s236 = sld [smem:[#allocation4 + $0x24]]
    %s237 = sld [smem:[#allocation4 + $0x25]]
    %s238 = sld [smem:[#allocation4 + $0x26]]
    %s239 = sld [smem:[#allocation4 + $0x27]]
    %s240 = sld [smem:[#allocation4 + $0x28]]
    %s241 = sld [smem:[#allocation4 + $0x29]]
    %s242 = sld [smem:[#allocation4 + $0x2a]]
    %s243 = sld [smem:[#allocation4 + $0x2b]]
    %s244 = sld [smem:[#allocation4 + $0x2c]]
    %s245 = sld [smem:[#allocation4 + $0x2d]]
    %s246 = sld [smem:[#allocation4 + $0x2e]]
    %s247 = sld [smem:[#allocation4 + $0x2f]]
    %s248 = sld [smem:[#allocation4 + $0x30]]
    %s249 = sld [smem:[#allocation4 + $0x31]]
    %s250 = sld [smem:[#allocation4 + $0x32]]
    %s251 = sld [smem:[#allocation4 + $0x33]]
    %s252 = sld [smem:[#allocation4 + $0x34]]
    %s253 = sld [smem:[#allocation4 + $0x35]]
    %s254 = sld [smem:[#allocation4 + $0x36]]
    %s255 = sld [smem:[#allocation4 + $0x37]]
    %s256 = sld [smem:[#allocation4 + $0x38]]
    %s257 = sld [smem:[#allocation4 + $0x39]]
    %s258 = sld [smem:[#allocation4 + $0x3a]]
    %s259 = sld [smem:[#allocation4 + $0x3b]]
    %s260 = sld [smem:[#allocation4 + $0x3c]]
    %s261 = sld [smem:[#allocation4 + $0x3d]]
    %s262 = sld [smem:[#allocation4 + $0x3e]]
    %s263 = sld [smem:[#allocation4 + $0x3f]]
    %s264 = sld [smem:[#allocation4 + $0x40]]
    %s265 = sld [smem:[#allocation4 + $0x41]]
    %s266 = sld [smem:[#allocation4 + $0x42]]
    %s267 = sld [smem:[#allocation4 + $0x43]]
    %s268 = sld [smem:[#allocation4 + $0x44]]
    %s269 = sld [smem:[#allocation4 + $0x45]]
    %s270 = sld [smem:[#allocation4 + $0x46]]
    %s271 = sld [smem:[#allocation4 + $0x47]]
    %s272 = sld [smem:[#allocation4 + $0x48]]
    %s273 = sld [smem:[#allocation4 + $0x49]]
    %s274 = sld [smem:[#allocation4 + $0x4a]]
    %s275 = sld [smem:[#allocation4 + $0x4b]]
    %s276 = sld [smem:[#allocation4 + $0x4c]]
    %s277 = sld [smem:[#allocation4 + $0x4d]]
    %s278 = sld [smem:[#allocation4 + $0x4e]]
    %s279 = sld [smem:[#allocation4 + $0x4f]]
    %s280 = sld [smem:[#allocation4 + $0x50]]
    %s281 = sld [smem:[#allocation4 + $0x51]]
    %s282 = sld [smem:[#allocation4 + $0x52]]
    %s283 = sld [smem:[#allocation4 + $0x53]]
    %s284 = sld [smem:[#allocation4 + $0x54]]
    %s285 = sld [smem:[#allocation4 + $0x55]]
    %s286 = sld [smem:[#allocation4 + $0x56]]
    %s287 = sld [smem:[#allocation4 + $0x57]]
    %s288 = sld [smem:[#allocation4 + $0x58]]
    %s289 = sld [smem:[#allocation4 + $0x59]]
    %s290 = sld [smem:[#allocation4 + $0x5a]]
    %s291 = sld [smem:[#allocation4 + $0x5b]]
    %s292 = sld [smem:[#allocation4 + $0x5c]]
    %s293 = sld [smem:[#allocation4 + $0x5d]]
    %s294 = sld [smem:[#allocation4 + $0x5e]]
    %s295 = sld [smem:[#allocation4 + $0x5f]]
    %s296 = sld [smem:[#allocation4 + $0x60]]
    %s297 = sld [smem:[#allocation4 + $0x61]]
    %v298 = vld [vmem:[#allocation2] sm:$0x3f]
    %v299 = vstv %s200
    %v300 = vmul.f32 %v299, %v298
    %v301 = vstv %s207
    %v302 = vmul.f32 %v301, %v298
    %304 = vrot.lane.b32.xlu0 %v302, 112
    %v305 = vpop.permute.xlu0 %304
    %v306 = vrot.slane %v305, 2
    %vm307 = vcmask 916480
    %v308 = vsel %vm307, %v305, %v306
    %v310 = vadd.f32 %v300, %v308
    %v311 = vstv %s214
    %v312 = vmul.f32 %v311, %v298
    %314 = vrot.lane.b32.xlu0 %v312, 96
    %v315 = vpop.permute.xlu0 %314
    %v316 = vrot.slane %v315, 2
    %vm317 = vcmask 785408
    %v318 = vsel %vm317, %v315, %v316
    %v320 = vadd.f32 %v310, %v318
    %v321 = vstv %s221
    %v322 = vmul.f32 %v321, %v298
    %324 = vrot.lane.b32.xlu0 %v322, 80
    %v325 = vpop.permute.xlu0 %324
    %v326 = vrot.slane %v325, 2
    %vm327 = vcmask 654336
    %v328 = vsel %vm327, %v325, %v326
    %v330 = vadd.f32 %v320, %v328
    %v331 = vld [vmem:[#allocation2 + $0x2] sm:$0x3f]
    %v332 = vstv %s228
    %v333 = vmul.f32 %v332, %v331
    %335 = vrot.lane.b32.xlu0 %v333, 64
    %v336 = vpop.permute.xlu0 %335
    %v337 = vrot.slane %v336, 6
    %vm338 = vcmask 523264
    %v339 = vsel %vm338, %v337, %v336
    %v341 = vadd.f32 %v330, %v339
    %v342 = vstv %s235
    %v343 = vmul.f32 %v342, %v331
    %345 = vrot.lane.b32.xlu0 %v343, 48
    %v346 = vpop.permute.xlu0 %345
    %v347 = vrot.slane %v346, 6
    %vm348 = vcmask 392192
    %v349 = vsel %vm348, %v347, %v346
    %v351 = vadd.f32 %v341, %v349
    %v352 = vstv %s242
    %v353 = vmul.f32 %v352, %v331
    %355 = vrot.lane.b32.xlu0 %v353, 32
    %v356 = vpop.permute.xlu0 %355
    %v357 = vrot.slane %v356, 6
    %vm358 = vcmask 261120
    %v359 = vsel %vm358, %v357, %v356
    %v361 = vadd.f32 %v351, %v359
    %v362 = vld [vmem:[%s122] sm:$0x3f]
    %v363 = vstv %s249
    %v364 = vmul.f32 %v363, %v362
    %v365 = vadd.f32 %v361, %v364
    %v366 = vstv %s256
    %v367 = vmul.f32 %v366, %v362
    %369 = vrot.lane.b32.xlu0 %v367, 112
    %v370 = vpop.permute.xlu0 %369
    %v371 = vrot.slane %v370, 2
    %v372 = vsel %vm307, %v370, %v371
    %v374 = vadd.f32 %v365, %v372
    %v375 = vstv %s263
    %v376 = vmul.f32 %v375, %v362
    %378 = vrot.lane.b32.xlu0 %v376, 96
    %v379 = vpop.permute.xlu0 %378
    %v380 = vrot.slane %v379, 2
    %v381 = vsel %vm317, %v379, %v380
    %v383 = vadd.f32 %v374, %v381
    %v384 = vstv %s270
    %v385 = vmul.f32 %v384, %v362
    %387 = vrot.lane.b32.xlu0 %v385, 80
    %v388 = vpop.permute.xlu0 %387
    %v389 = vrot.slane %v388, 2
    %v390 = vsel %vm327, %v388, %v389
    %v392 = vadd.f32 %v383, %v390
    %v393 = vld [vmem:[%s122 + $0x2] sm:$0x3f]
    %v394 = vstv %s277
    %v395 = vmul.f32 %v394, %v393
    %397 = vrot.lane.b32.xlu0 %v395, 64
    %v398 = vpop.permute.xlu0 %397
    %v399 = vrot.slane %v398, 6
    %v400 = vsel %vm338, %v399, %v398
    %v402 = vadd.f32 %v392, %v400
    %v403 = vstv %s284
    %v404 = vmul.f32 %v403, %v393
    %406 = vrot.lane.b32.xlu0 %v404, 48
    %v407 = vpop.permute.xlu0 %406
    %v408 = vrot.slane %v407, 6
    %v409 = vsel %vm348, %v408, %v407
    %v411 = vadd.f32 %v402, %v409
    %v412 = vstv %s291
    %v413 = vmul.f32 %v412, %v393
    %415 = vrot.lane.b32.xlu0 %v413, 32
    %v416 = vpop.permute.xlu0 %415
    %v417 = vrot.slane %v416, 6
    %v418 = vsel %vm358, %v417, %v416
    %v420 = vadd.f32 %v411, %v418
    %v421 = vld [vmem:[#allocation5] ss:$8 sm:$0x3]
    %v423 = vlaneseq
    %v424 = vshrl.u32 %v423, 7
    %v425 = vsub.s32 0, %v424
    %v426 = vrot.slane %v421, %v425
    %v427 = vlaneseq
    %v428 = vshrl.u32 %v427, 7
    %v429 = vsub.s32 1, %v428
    %v430 = vrot.slane %v421, %v429
    %v434 = vcombine.high %v420, %v420
    %v436 = vunpack.c.l.s4 1983009808
    %v437 = vunpack.c.0.s8 %v436
    %v438 = vlaneseq
    %v439 = vshrl.u32 %v438, 7
    %v440 = vsub.s32 %v437, %v439
    %v441 = vrot.slane %v420, %v440
    %v443 = vunpack.c.l.s4 1983009808
    %v444 = vunpack.c.0.s8 %v443
    %v445 = vlaneseq
    %v446 = vshrl.u32 %v445, 7
    %v447 = vsub.s32 %v444, %v446
    %v448 = vrot.slane %v434, %v447
    %v449 = vcombine.high %v441, %v441
    %450 = vrot.lane.b32.xlu0 %v441, 51
    %v451 = vpop.permute.xlu0 %450
    %452 = vrot.lane.b32.xlu0 %v449, 51
    %v453 = vpop.permute.xlu0 %452
    %454 = vrot.lane.b32.xlu0 %v448, 51
    %v455 = vpop.permute.xlu0 %454
    %vm456 = vcmask 416768
    %v457 = vsel %vm456, %v451, %v453
    %v458 = vsel %vm456, %v453, %v455
    %v461 = vmul.f32 %v426, %v457
    %v462 = vmul.f32 %v430, %v458
    %v463 = vstv %s201
    %v464 = vmul.f32 %v463, %v298
    %v465 = vstv %s208
    %v466 = vmul.f32 %v465, %v298
    %468 = vrot.lane.b32.xlu0 %v466, 112
    %v469 = vpop.permute.xlu0 %468
    %v470 = vrot.slane %v469, 2
    %v471 = vsel %vm307, %v469, %v470
    %v473 = vadd.f32 %v464, %v471
    %v474 = vstv %s215
    %v475 = vmul.f32 %v474, %v298
    %477 = vrot.lane.b32.xlu0 %v475, 96
    %v478 = vpop.permute.xlu0 %477
    %v479 = vrot.slane %v478, 2
    %v480 = vsel %vm317, %v478, %v479
    %v482 = vadd.f32 %v473, %v480
    %v483 = vstv %s222
    %v484 = vmul.f32 %v483, %v298
    %486 = vrot.lane.b32.xlu0 %v484, 80
    %v487 = vpop.permute.xlu0 %486
    %v488 = vrot.slane %v487, 2
    %v489 = vsel %vm327, %v487, %v488
    %v491 = vadd.f32 %v482, %v489
    %v492 = vstv %s229
    %v493 = vmul.f32 %v492, %v331
    %495 = vrot.lane.b32.xlu0 %v493, 64
    %v496 = vpop.permute.xlu0 %495
    %v497 = vrot.slane %v496, 6
    %v498 = vsel %vm338, %v497, %v496
    %v500 = vadd.f32 %v491, %v498
    %v501 = vstv %s236
    %v502 = vmul.f32 %v501, %v331
    %504 = vrot.lane.b32.xlu0 %v502, 48
    %v505 = vpop.permute.xlu0 %504
    %v506 = vrot.slane %v505, 6
    %v507 = vsel %vm348, %v506, %v505
    %v509 = vadd.f32 %v500, %v507
    %v510 = vstv %s243
    %v511 = vmul.f32 %v510, %v331
    %513 = vrot.lane.b32.xlu0 %v511, 32
    %v514 = vpop.permute.xlu0 %513
    %v515 = vrot.slane %v514, 6
    %v516 = vsel %vm358, %v515, %v514
    %v518 = vadd.f32 %v509, %v516
    %v519 = vstv %s250
    %v520 = vmul.f32 %v519, %v362
    %v521 = vadd.f32 %v518, %v520
    %v522 = vstv %s257
    %v523 = vmul.f32 %v522, %v362
    %525 = vrot.lane.b32.xlu0 %v523, 112
    %v526 = vpop.permute.xlu0 %525
    %v527 = vrot.slane %v526, 2
    %v528 = vsel %vm307, %v526, %v527
    %v530 = vadd.f32 %v521, %v528
    %v531 = vstv %s264
    %v532 = vmul.f32 %v531, %v362
    %534 = vrot.lane.b32.xlu0 %v532, 96
    %v535 = vpop.permute.xlu0 %534
    %v536 = vrot.slane %v535, 2
    %v537 = vsel %vm317, %v535, %v536
    %v539 = vadd.f32 %v530, %v537
    %v540 = vstv %s271
    %v541 = vmul.f32 %v540, %v362
    %543 = vrot.lane.b32.xlu0 %v541, 80
    %v544 = vpop.permute.xlu0 %543
    %v545 = vrot.slane %v544, 2
    %v546 = vsel %vm327, %v544, %v545
    %v548 = vadd.f32 %v539, %v546
    %v549 = vstv %s278
    %v550 = vmul.f32 %v549, %v393
    %552 = vrot.lane.b32.xlu0 %v550, 64
    %v553 = vpop.permute.xlu0 %552
    %v554 = vrot.slane %v553, 6
    %v555 = vsel %vm338, %v554, %v553
    %v557 = vadd.f32 %v548, %v555
    %v558 = vstv %s285
    %v559 = vmul.f32 %v558, %v393
    %561 = vrot.lane.b32.xlu0 %v559, 48
    %v562 = vpop.permute.xlu0 %561
    %v563 = vrot.slane %v562, 6
    %v564 = vsel %vm348, %v563, %v562
    %v566 = vadd.f32 %v557, %v564
    %v567 = vstv %s292
    %v568 = vmul.f32 %v567, %v393
    %570 = vrot.lane.b32.xlu0 %v568, 32
    %v571 = vpop.permute.xlu0 %570
    %v572 = vrot.slane %v571, 6
    %v573 = vsel %vm358, %v572, %v571
    %v575 = vadd.f32 %v566, %v573
    %s576 = scalar_lea.vmem [#allocation5], 1
    %v577 = vld [vmem:[%s576] ss:$8 sm:$0x3]
    %v579 = vlaneseq
    %v580 = vshrl.u32 %v579, 7
    %v581 = vsub.s32 0, %v580
    %v582 = vrot.slane %v577, %v581
    %v583 = vlaneseq
    %v584 = vshrl.u32 %v583, 7
    %v585 = vsub.s32 1, %v584
    %v586 = vrot.slane %v577, %v585
    %v590 = vcombine.high %v575, %v575
    %v592 = vunpack.c.l.s4 1983009808
    %v593 = vunpack.c.0.s8 %v592
    %v594 = vlaneseq
    %v595 = vshrl.u32 %v594, 7
    %v596 = vsub.s32 %v593, %v595
    %v597 = vrot.slane %v575, %v596
    %v599 = vunpack.c.l.s4 1983009808
    %v600 = vunpack.c.0.s8 %v599
    %v601 = vlaneseq
    %v602 = vshrl.u32 %v601, 7
    %v603 = vsub.s32 %v600, %v602
    %v604 = vrot.slane %v590, %v603
    %v605 = vcombine.high %v597, %v597
    %606 = vrot.lane.b32.xlu0 %v597, 50
    %v607 = vpop.permute.xlu0 %606
    %608 = vrot.lane.b32.xlu0 %v605, 50
    %v609 = vpop.permute.xlu0 %608
    %610 = vrot.lane.b32.xlu0 %v604, 50
    %v611 = vpop.permute.xlu0 %610
    %vm612 = vcmask 408576
    %v613 = vsel %vm612, %v607, %v609
    %v614 = vsel %vm612, %v609, %v611
    %v617 = vmul.f32 %v582, %v613
    %v618 = vmul.f32 %v586, %v614
    %v619 = vadd.f32 %v461, %v617
    %v620 = vadd.f32 %v462, %v618
    %v621 = vstv %s202
    %v622 = vmul.f32 %v621, %v298
    %v623 = vstv %s209
    %v624 = vmul.f32 %v623, %v298
    %626 = vrot.lane.b32.xlu0 %v624, 112
    %v627 = vpop.permute.xlu0 %626
    %v628 = vrot.slane %v627, 2
    %v629 = vsel %vm307, %v627, %v628
    %v631 = vadd.f32 %v622, %v629
    %v632 = vstv %s216
    %v633 = vmul.f32 %v632, %v298
    %635 = vrot.lane.b32.xlu0 %v633, 96
    %v636 = vpop.permute.xlu0 %635
    %v637 = vrot.slane %v636, 2
    %v638 = vsel %vm317, %v636, %v637
    %v640 = vadd.f32 %v631, %v638
    %v641 = vstv %s223
    %v642 = vmul.f32 %v641, %v298
    %644 = vrot.lane.b32.xlu0 %v642, 80
    %v645 = vpop.permute.xlu0 %644
    %v646 = vrot.slane %v645, 2
    %v647 = vsel %vm327, %v645, %v646
    %v649 = vadd.f32 %v640, %v647
    %v650 = vstv %s230
    %v651 = vmul.f32 %v650, %v331
    %653 = vrot.lane.b32.xlu0 %v651, 64
    %v654 = vpop.permute.xlu0 %653
    %v655 = vrot.slane %v654, 6
    %v656 = vsel %vm338, %v655, %v654
    %v658 = vadd.f32 %v649, %v656
    %v659 = vstv %s237
    %v660 = vmul.f32 %v659, %v331
    %662 = vrot.lane.b32.xlu0 %v660, 48
    %v663 = vpop.permute.xlu0 %662
    %v664 = vrot.slane %v663, 6
    %v665 = vsel %vm348, %v664, %v663
    %v667 = vadd.f32 %v658, %v665
    %v668 = vstv %s244
    %v669 = vmul.f32 %v668, %v331
    %671 = vrot.lane.b32.xlu0 %v669, 32
    %v672 = vpop.permute.xlu0 %671
    %v673 = vrot.slane %v672, 6
    %v674 = vsel %vm358, %v673, %v672
    %v676 = vadd.f32 %v667, %v674
    %v677 = vstv %s251
    %v678 = vmul.f32 %v677, %v362
    %v679 = vadd.f32 %v676, %v678
    %v680 = vstv %s258
    %v681 = vmul.f32 %v680, %v362
    %683 = vrot.lane.b32.xlu0 %v681, 112
    %v684 = vpop.permute.xlu0 %683
    %v685 = vrot.slane %v684, 2
    %v686 = vsel %vm307, %v684, %v685
    %v688 = vadd.f32 %v679, %v686
    %v689 = vstv %s265
    %v690 = vmul.f32 %v689, %v362
    %692 = vrot.lane.b32.xlu0 %v690, 96
    %v693 = vpop.permute.xlu0 %692
    %v694 = vrot.slane %v693, 2
    %v695 = vsel %vm317, %v693, %v694
    %v697 = vadd.f32 %v688, %v695
    %v698 = vstv %s272
    %v699 = vmul.f32 %v698, %v362
    %701 = vrot.lane.b32.xlu0 %v699, 80
    %v702 = vpop.permute.xlu0 %701
    %v703 = vrot.slane %v702, 2
    %v704 = vsel %vm327, %v702, %v703
    %v706 = vadd.f32 %v697, %v704
    %v707 = vstv %s279
    %v708 = vmul.f32 %v707, %v393
    %710 = vrot.lane.b32.xlu0 %v708, 64
    %v711 = vpop.permute.xlu0 %710
    %v712 = vrot.slane %v711, 6
    %v713 = vsel %vm338, %v712, %v711
    %v715 = vadd.f32 %v706, %v713
    %v716 = vstv %s286
    %v717 = vmul.f32 %v716, %v393
    %719 = vrot.lane.b32.xlu0 %v717, 48
    %v720 = vpop.permute.xlu0 %719
    %v721 = vrot.slane %v720, 6
    %v722 = vsel %vm348, %v721, %v720
    %v724 = vadd.f32 %v715, %v722
    %v725 = vstv %s293
    %v726 = vmul.f32 %v725, %v393
    %728 = vrot.lane.b32.xlu0 %v726, 32
    %v729 = vpop.permute.xlu0 %728
    %v730 = vrot.slane %v729, 6
    %v731 = vsel %vm358, %v730, %v729
    %v733 = vadd.f32 %v724, %v731
    %s734 = scalar_lea.vmem [#allocation5], 2
    %v735 = vld [vmem:[%s734] ss:$8 sm:$0x3]
    %v737 = vlaneseq
    %v738 = vshrl.u32 %v737, 7
    %v739 = vsub.s32 0, %v738
    %v740 = vrot.slane %v735, %v739
    %v741 = vlaneseq
    %v742 = vshrl.u32 %v741, 7
    %v743 = vsub.s32 1, %v742
    %v744 = vrot.slane %v735, %v743
    %v748 = vcombine.high %v733, %v733
    %v750 = vunpack.c.l.s4 1983009808
    %v751 = vunpack.c.0.s8 %v750
    %v752 = vlaneseq
    %v753 = vshrl.u32 %v752, 7
    %v754 = vsub.s32 %v751, %v753
    %v755 = vrot.slane %v733, %v754
    %v757 = vunpack.c.l.s4 1983009808
    %v758 = vunpack.c.0.s8 %v757
    %v759 = vlaneseq
    %v760 = vshrl.u32 %v759, 7
    %v761 = vsub.s32 %v758, %v760
    %v762 = vrot.slane %v748, %v761
    %v763 = vcombine.high %v755, %v755
    %764 = vrot.lane.b32.xlu0 %v755, 49
    %v765 = vpop.permute.xlu0 %764
    %766 = vrot.lane.b32.xlu0 %v763, 49
    %v767 = vpop.permute.xlu0 %766
    %768 = vrot.lane.b32.xlu0 %v762, 49
    %v769 = vpop.permute.xlu0 %768
    %vm770 = vcmask 400384
    %v771 = vsel %vm770, %v765, %v767
    %v772 = vsel %vm770, %v767, %v769
    %v775 = vmul.f32 %v740, %v771
    %v776 = vmul.f32 %v744, %v772
    %v777 = vadd.f32 %v619, %v775
    %v778 = vadd.f32 %v620, %v776
    %v779 = vstv %s203
    %v780 = vmul.f32 %v779, %v298
    %v781 = vstv %s210
    %v782 = vmul.f32 %v781, %v298
    %784 = vrot.lane.b32.xlu0 %v782, 112
    %v785 = vpop.permute.xlu0 %784
    %v786 = vrot.slane %v785, 2
    %v787 = vsel %vm307, %v785, %v786
    %v789 = vadd.f32 %v780, %v787
    %v790 = vstv %s217
    %v791 = vmul.f32 %v790, %v298
    %793 = vrot.lane.b32.xlu0 %v791, 96
    %v794 = vpop.permute.xlu0 %793
    %v795 = vrot.slane %v794, 2
    %v796 = vsel %vm317, %v794, %v795
    %v798 = vadd.f32 %v789, %v796
    %v799 = vld [vmem:[#allocation2 + $0x2] sm:$0xf]
    %v800 = vstv %s224
    %v801 = vmul.f32 %v800, %v799
    %803 = vrot.lane.b32.xlu0 %v801, 80
    %v804 = vpop.permute.xlu0 %803
    %v805 = vrot.slane %v804, 6
    %v806 = vsel %vm327, %v805, %v804
    %v808 = vadd.f32 %v798, %v806
    %v809 = vstv %s231
    %v810 = vmul.f32 %v809, %v331
    %812 = vrot.lane.b32.xlu0 %v810, 64
    %v813 = vpop.permute.xlu0 %812
    %v814 = vrot.slane %v813, 6
    %v815 = vsel %vm338, %v814, %v813
    %v817 = vadd.f32 %v808, %v815
    %v818 = vstv %s238
    %v819 = vmul.f32 %v818, %v331
    %821 = vrot.lane.b32.xlu0 %v819, 48
    %v822 = vpop.permute.xlu0 %821
    %v823 = vrot.slane %v822, 6
    %v824 = vsel %vm348, %v823, %v822
    %v826 = vadd.f32 %v817, %v824
    %v827 = vstv %s245
    %v828 = vmul.f32 %v827, %v331
    %830 = vrot.lane.b32.xlu0 %v828, 32
    %v831 = vpop.permute.xlu0 %830
    %v832 = vrot.slane %v831, 6
    %v833 = vsel %vm358, %v832, %v831
    %v835 = vadd.f32 %v826, %v833
    %v836 = vstv %s252
    %v837 = vmul.f32 %v836, %v362
    %v838 = vadd.f32 %v835, %v837
    %v839 = vstv %s259
    %v840 = vmul.f32 %v839, %v362
    %842 = vrot.lane.b32.xlu0 %v840, 112
    %v843 = vpop.permute.xlu0 %842
    %v844 = vrot.slane %v843, 2
    %v845 = vsel %vm307, %v843, %v844
    %v847 = vadd.f32 %v838, %v845
    %v848 = vstv %s266
    %v849 = vmul.f32 %v848, %v362
    %851 = vrot.lane.b32.xlu0 %v849, 96
    %v852 = vpop.permute.xlu0 %851
    %v853 = vrot.slane %v852, 2
    %v854 = vsel %vm317, %v852, %v853
    %v856 = vadd.f32 %v847, %v854
    %v857 = vld [vmem:[%s122 + $0x2] sm:$0xf]
    %v858 = vstv %s273
    %v859 = vmul.f32 %v858, %v857
    %861 = vrot.lane.b32.xlu0 %v859, 80
    %v862 = vpop.permute.xlu0 %861
    %v863 = vrot.slane %v862, 6
    %v864 = vsel %vm327, %v863, %v862
    %v866 = vadd.f32 %v856, %v864
    %v867 = vstv %s280
    %v868 = vmul.f32 %v867, %v393
    %870 = vrot.lane.b32.xlu0 %v868, 64
    %v871 = vpop.permute.xlu0 %870
    %v872 = vrot.slane %v871, 6
    %v873 = vsel %vm338, %v872, %v871
    %v875 = vadd.f32 %v866, %v873
    %v876 = vstv %s287
    %v877 = vmul.f32 %v876, %v393
    %879 = vrot.lane.b32.xlu0 %v877, 48
    %v880 = vpop.permute.xlu0 %879
    %v881 = vrot.slane %v880, 6
    %v882 = vsel %vm348, %v881, %v880
    %v884 = vadd.f32 %v875, %v882
    %v885 = vstv %s294
    %v886 = vmul.f32 %v885, %v393
    %888 = vrot.lane.b32.xlu0 %v886, 32
    %v889 = vpop.permute.xlu0 %888
    %v890 = vrot.slane %v889, 6
    %v891 = vsel %vm358, %v890, %v889
    %v893 = vadd.f32 %v884, %v891
    %s894 = scalar_lea.vmem [#allocation5], 3
    %v895 = vld [vmem:[%s894] ss:$8 sm:$0x3]
    %v897 = vlaneseq
    %v898 = vshrl.u32 %v897, 7
    %v899 = vsub.s32 0, %v898
    %v900 = vrot.slane %v895, %v899
    %v901 = vlaneseq
    %v902 = vshrl.u32 %v901, 7
    %v903 = vsub.s32 1, %v902
    %v904 = vrot.slane %v895, %v903
    %v908 = vcombine.high %v893, %v893
    %v910 = vunpack.c.l.s4 1983009808
    %v911 = vunpack.c.0.s8 %v910
    %v912 = vlaneseq
    %v913 = vshrl.u32 %v912, 7
    %v914 = vsub.s32 %v911, %v913
    %v915 = vrot.slane %v893, %v914
    %v917 = vunpack.c.l.s4 1983009808
    %v918 = vunpack.c.0.s8 %v917
    %v919 = vlaneseq
    %v920 = vshrl.u32 %v919, 7
    %v921 = vsub.s32 %v918, %v920
    %v922 = vrot.slane %v908, %v921
    %v923 = vcombine.high %v915, %v915
    %924 = vrot.lane.b32.xlu0 %v915, 48
    %v925 = vpop.permute.xlu0 %924
    %926 = vrot.lane.b32.xlu0 %v923, 48
    %v927 = vpop.permute.xlu0 %926
    %928 = vrot.lane.b32.xlu0 %v922, 48
    %v929 = vpop.permute.xlu0 %928
    %v930 = vsel %vm348, %v925, %v927
    %v931 = vsel %vm348, %v927, %v929
    %v934 = vmul.f32 %v900, %v930
    %v935 = vmul.f32 %v904, %v931
    %v936 = vadd.f32 %v777, %v934
    %v937 = vadd.f32 %v778, %v935
    %v938 = vstv %s204
    %v939 = vmul.f32 %v938, %v298
    %v940 = vstv %s211
    %v941 = vmul.f32 %v940, %v298
    %943 = vrot.lane.b32.xlu0 %v941, 112
    %v944 = vpop.permute.xlu0 %943
    %v945 = vrot.slane %v944, 2
    %v946 = vsel %vm307, %v944, %v945
    %v948 = vadd.f32 %v939, %v946
    %v949 = vstv %s218
    %v950 = vmul.f32 %v949, %v298
    %952 = vrot.lane.b32.xlu0 %v950, 96
    %v953 = vpop.permute.xlu0 %952
    %v954 = vrot.slane %v953, 2
    %v955 = vsel %vm317, %v953, %v954
    %v957 = vadd.f32 %v948, %v955
    %v958 = vstv %s225
    %v959 = vmul.f32 %v958, %v331
    %961 = vrot.lane.b32.xlu0 %v959, 80
    %v962 = vpop.permute.xlu0 %961
    %v963 = vrot.slane %v962, 6
    %v964 = vsel %vm327, %v963, %v962
    %v966 = vadd.f32 %v957, %v964
    %v967 = vstv %s232
    %v968 = vmul.f32 %v967, %v331
    %970 = vrot.lane.b32.xlu0 %v968, 64
    %v971 = vpop.permute.xlu0 %970
    %v972 = vrot.slane %v971, 6
    %v973 = vsel %vm338, %v972, %v971
    %v975 = vadd.f32 %v966, %v973
    %v976 = vstv %s239
    %v977 = vmul.f32 %v976, %v331
    %979 = vrot.lane.b32.xlu0 %v977, 48
    %v980 = vpop.permute.xlu0 %979
    %v981 = vrot.slane %v980, 6
    %v982 = vsel %vm348, %v981, %v980
    %v984 = vadd.f32 %v975, %v982
    %v985 = vstv %s246
    %v986 = vmul.f32 %v985, %v331
    %988 = vrot.lane.b32.xlu0 %v986, 32
    %v989 = vpop.permute.xlu0 %988
    %v990 = vrot.slane %v989, 6
    %v991 = vsel %vm358, %v990, %v989
    %v993 = vadd.f32 %v984, %v991
    %v994 = vstv %s253
    %v995 = vmul.f32 %v994, %v362
    %v996 = vadd.f32 %v993, %v995
    %v997 = vstv %s260
    %v998 = vmul.f32 %v997, %v362
    %1000 = vrot.lane.b32.xlu0 %v998, 112
    %v1001 = vpop.permute.xlu0 %1000
    %v1002 = vrot.slane %v1001, 2
    %v1003 = vsel %vm307, %v1001, %v1002
    %v1005 = vadd.f32 %v996, %v1003
    %v1006 = vstv %s267
    %v1007 = vmul.f32 %v1006, %v362
    %1009 = vrot.lane.b32.xlu0 %v1007, 96
    %v1010 = vpop.permute.xlu0 %1009
    %v1011 = vrot.slane %v1010, 2
    %v1012 = vsel %vm317, %v1010, %v1011
    %v1014 = vadd.f32 %v1005, %v1012
    %v1015 = vstv %s274
    %v1016 = vmul.f32 %v1015, %v393
    %1018 = vrot.lane.b32.xlu0 %v1016, 80
    %v1019 = vpop.permute.xlu0 %1018
    %v1020 = vrot.slane %v1019, 6
    %v1021 = vsel %vm327, %v1020, %v1019
    %v1023 = vadd.f32 %v1014, %v1021
    %v1024 = vstv %s281
    %v1025 = vmul.f32 %v1024, %v393
    %1027 = vrot.lane.b32.xlu0 %v1025, 64
    %v1028 = vpop.permute.xlu0 %1027
    %v1029 = vrot.slane %v1028, 6
    %v1030 = vsel %vm338, %v1029, %v1028
    %v1032 = vadd.f32 %v1023, %v1030
    %v1033 = vstv %s288
    %v1034 = vmul.f32 %v1033, %v393
    %1036 = vrot.lane.b32.xlu0 %v1034, 48
    %v1037 = vpop.permute.xlu0 %1036
    %v1038 = vrot.slane %v1037, 6
    %v1039 = vsel %vm348, %v1038, %v1037
    %v1041 = vadd.f32 %v1032, %v1039
    %v1042 = vstv %s295
    %v1043 = vmul.f32 %v1042, %v393
    %1045 = vrot.lane.b32.xlu0 %v1043, 32
    %v1046 = vpop.permute.xlu0 %1045
    %v1047 = vrot.slane %v1046, 6
    %v1048 = vsel %vm358, %v1047, %v1046
    %v1050 = vadd.f32 %v1041, %v1048
    %s1051 = scalar_lea.vmem [#allocation5], 4
    %v1052 = vld [vmem:[%s1051] ss:$8 sm:$0x3]
    %v1054 = vlaneseq
    %v1055 = vshrl.u32 %v1054, 7
    %v1056 = vsub.s32 0, %v1055
    %v1057 = vrot.slane %v1052, %v1056
    %v1058 = vlaneseq
    %v1059 = vshrl.u32 %v1058, 7
    %v1060 = vsub.s32 1, %v1059
    %v1061 = vrot.slane %v1052, %v1060
    %v1065 = vcombine.high %v1050, %v1050
    %v1067 = vunpack.c.l.s4 1983009808
    %v1068 = vunpack.c.0.s8 %v1067
    %v1069 = vlaneseq
    %v1070 = vshrl.u32 %v1069, 7
    %v1071 = vsub.s32 %v1068, %v1070
    %v1072 = vrot.slane %v1050, %v1071
    %v1074 = vunpack.c.l.s4 1983009808
    %v1075 = vunpack.c.0.s8 %v1074
    %v1076 = vlaneseq
    %v1077 = vshrl.u32 %v1076, 7
    %v1078 = vsub.s32 %v1075, %v1077
    %v1079 = vrot.slane %v1065, %v1078
    %v1080 = vcombine.high %v1072, %v1072
    %1081 = vrot.lane.b32.xlu0 %v1072, 47
    %v1082 = vpop.permute.xlu0 %1081
    %1083 = vrot.lane.b32.xlu0 %v1080, 47
    %v1084 = vpop.permute.xlu0 %1083
    %1085 = vrot.lane.b32.xlu0 %v1079, 47
    %v1086 = vpop.permute.xlu0 %1085
    %vm1087 = vcmask 384000
    %v1088 = vsel %vm1087, %v1082, %v1084
    %v1089 = vsel %vm1087, %v1084, %v1086
    %v1092 = vmul.f32 %v1057, %v1088
    %v1093 = vmul.f32 %v1061, %v1089
    %v1094 = vadd.f32 %v936, %v1092
    %v1095 = vadd.f32 %v937, %v1093
    %v1096 = vstv %s205
    %v1097 = vmul.f32 %v1096, %v298
    %v1098 = vstv %s212
    %v1099 = vmul.f32 %v1098, %v298
    %1101 = vrot.lane.b32.xlu0 %v1099, 112
    %v1102 = vpop.permute.xlu0 %1101
    %v1103 = vrot.slane %v1102, 2
    %v1104 = vsel %vm307, %v1102, %v1103
    %v1106 = vadd.f32 %v1097, %v1104
    %v1107 = vstv %s219
    %v1108 = vmul.f32 %v1107, %v298
    %1110 = vrot.lane.b32.xlu0 %v1108, 96
    %v1111 = vpop.permute.xlu0 %1110
    %v1112 = vrot.slane %v1111, 2
    %v1113 = vsel %vm317, %v1111, %v1112
    %v1115 = vadd.f32 %v1106, %v1113
    %v1116 = vstv %s226
    %v1117 = vmul.f32 %v1116, %v331
    %1119 = vrot.lane.b32.xlu0 %v1117, 80
    %v1120 = vpop.permute.xlu0 %1119
    %v1121 = vrot.slane %v1120, 6
    %v1122 = vsel %vm327, %v1121, %v1120
    %v1124 = vadd.f32 %v1115, %v1122
    %v1125 = vstv %s233
    %v1126 = vmul.f32 %v1125, %v331
    %1128 = vrot.lane.b32.xlu0 %v1126, 64
    %v1129 = vpop.permute.xlu0 %1128
    %v1130 = vrot.slane %v1129, 6
    %v1131 = vsel %vm338, %v1130, %v1129
    %v1133 = vadd.f32 %v1124, %v1131
    %v1134 = vstv %s240
    %v1135 = vmul.f32 %v1134, %v331
    %1137 = vrot.lane.b32.xlu0 %v1135, 48
    %v1138 = vpop.permute.xlu0 %1137
    %v1139 = vrot.slane %v1138, 6
    %v1140 = vsel %vm348, %v1139, %v1138
    %v1142 = vadd.f32 %v1133, %v1140
    %v1143 = vstv %s247
    %v1144 = vmul.f32 %v1143, %v331
    %1146 = vrot.lane.b32.xlu0 %v1144, 32
    %v1147 = vpop.permute.xlu0 %1146
    %v1148 = vrot.slane %v1147, 6
    %v1149 = vsel %vm358, %v1148, %v1147
    %v1151 = vadd.f32 %v1142, %v1149
    %v1152 = vstv %s254
    %v1153 = vmul.f32 %v1152, %v362
    %v1154 = vadd.f32 %v1151, %v1153
    %v1155 = vstv %s261
    %v1156 = vmul.f32 %v1155, %v362
    %1158 = vrot.lane.b32.xlu0 %v1156, 112
    %v1159 = vpop.permute.xlu0 %1158
    %v1160 = vrot.slane %v1159, 2
    %v1161 = vsel %vm307, %v1159, %v1160
    %v1163 = vadd.f32 %v1154, %v1161
    %v1164 = vstv %s268
    %v1165 = vmul.f32 %v1164, %v362
    %1167 = vrot.lane.b32.xlu0 %v1165, 96
    %v1168 = vpop.permute.xlu0 %1167
    %v1169 = vrot.slane %v1168, 2
    %v1170 = vsel %vm317, %v1168, %v1169
    %v1172 = vadd.f32 %v1163, %v1170
    %v1173 = vstv %s275
    %v1174 = vmul.f32 %v1173, %v393
    %1176 = vrot.lane.b32.xlu0 %v1174, 80
    %v1177 = vpop.permute.xlu0 %1176
    %v1178 = vrot.slane %v1177, 6
    %v1179 = vsel %vm327, %v1178, %v1177
    %v1181 = vadd.f32 %v1172, %v1179
    %v1182 = vstv %s282
    %v1183 = vmul.f32 %v1182, %v393
    %1185 = vrot.lane.b32.xlu0 %v1183, 64
    %v1186 = vpop.permute.xlu0 %1185
    %v1187 = vrot.slane %v1186, 6
    %v1188 = vsel %vm338, %v1187, %v1186
    %v1190 = vadd.f32 %v1181, %v1188
    %v1191 = vstv %s289
    %v1192 = vmul.f32 %v1191, %v393
    %1194 = vrot.lane.b32.xlu0 %v1192, 48
    %v1195 = vpop.permute.xlu0 %1194
    %v1196 = vrot.slane %v1195, 6
    %v1197 = vsel %vm348, %v1196, %v1195
    %v1199 = vadd.f32 %v1190, %v1197
    %v1200 = vstv %s296
    %v1201 = vmul.f32 %v1200, %v393
    %1203 = vrot.lane.b32.xlu0 %v1201, 32
    %v1204 = vpop.permute.xlu0 %1203
    %v1205 = vrot.slane %v1204, 6
    %v1206 = vsel %vm358, %v1205, %v1204
    %v1208 = vadd.f32 %v1199, %v1206
    %s1209 = scalar_lea.vmem [#allocation5], 5
    %v1210 = vld [vmem:[%s1209] ss:$8 sm:$0x3]
    %v1212 = vlaneseq
    %v1213 = vshrl.u32 %v1212, 7
    %v1214 = vsub.s32 0, %v1213
    %v1215 = vrot.slane %v1210, %v1214
    %v1216 = vlaneseq
    %v1217 = vshrl.u32 %v1216, 7
    %v1218 = vsub.s32 1, %v1217
    %v1219 = vrot.slane %v1210, %v1218
    %v1223 = vcombine.high %v1208, %v1208
    %v1225 = vunpack.c.l.s4 1983009808
    %v1226 = vunpack.c.0.s8 %v1225
    %v1227 = vlaneseq
    %v1228 = vshrl.u32 %v1227, 7
    %v1229 = vsub.s32 %v1226, %v1228
    %v1230 = vrot.slane %v1208, %v1229
    %v1232 = vunpack.c.l.s4 1983009808
    %v1233 = vunpack.c.0.s8 %v1232
    %v1234 = vlaneseq
    %v1235 = vshrl.u32 %v1234, 7
    %v1236 = vsub.s32 %v1233, %v1235
    %v1237 = vrot.slane %v1223, %v1236
    %v1238 = vcombine.high %v1230, %v1230
    %1239 = vrot.lane.b32.xlu0 %v1230, 46
    %v1240 = vpop.permute.xlu0 %1239
    %1241 = vrot.lane.b32.xlu0 %v1238, 46
    %v1242 = vpop.permute.xlu0 %1241
    %1243 = vrot.lane.b32.xlu0 %v1237, 46
    %v1244 = vpop.permute.xlu0 %1243
    %vm1245 = vcmask 375808
    %v1246 = vsel %vm1245, %v1240, %v1242
    %v1247 = vsel %vm1245, %v1242, %v1244
    %v1250 = vmul.f32 %v1215, %v1246
    %v1251 = vmul.f32 %v1219, %v1247
    %v1252 = vadd.f32 %v1094, %v1250
    %v1253 = vadd.f32 %v1095, %v1251
    %v1254 = vstv %s206
    %v1255 = vmul.f32 %v1254, %v298
    %v1256 = vstv %s213
    %v1257 = vmul.f32 %v1256, %v298
    %1259 = vrot.lane.b32.xlu0 %v1257, 112
    %v1260 = vpop.permute.xlu0 %1259
    %v1261 = vrot.slane %v1260, 2
    %v1262 = vsel %vm307, %v1260, %v1261
    %v1264 = vadd.f32 %v1255, %v1262
    %v1265 = vstv %s220
    %v1266 = vmul.f32 %v1265, %v298
    %1268 = vrot.lane.b32.xlu0 %v1266, 96
    %v1269 = vpop.permute.xlu0 %1268
    %v1270 = vrot.slane %v1269, 2
    %v1271 = vsel %vm317, %v1269, %v1270
    %v1273 = vadd.f32 %v1264, %v1271
    %v1274 = vstv %s227
    %v1275 = vmul.f32 %v1274, %v331
    %1277 = vrot.lane.b32.xlu0 %v1275, 80
    %v1278 = vpop.permute.xlu0 %1277
    %v1279 = vrot.slane %v1278, 6
    %v1280 = vsel %vm327, %v1279, %v1278
    %v1282 = vadd.f32 %v1273, %v1280
    %v1283 = vstv %s234
    %v1284 = vmul.f32 %v1283, %v331
    %1286 = vrot.lane.b32.xlu0 %v1284, 64
    %v1287 = vpop.permute.xlu0 %1286
    %v1288 = vrot.slane %v1287, 6
    %v1289 = vsel %vm338, %v1288, %v1287
    %v1291 = vadd.f32 %v1282, %v1289
    %v1292 = vstv %s241
    %v1293 = vmul.f32 %v1292, %v331
    %1295 = vrot.lane.b32.xlu0 %v1293, 48
    %v1296 = vpop.permute.xlu0 %1295
    %v1297 = vrot.slane %v1296, 6
    %v1298 = vsel %vm348, %v1297, %v1296
    %v1300 = vadd.f32 %v1291, %v1298
    %v1301 = vstv %s248
    %v1302 = vmul.f32 %v1301, %v331
    %1304 = vrot.lane.b32.xlu0 %v1302, 32
    %v1305 = vpop.permute.xlu0 %1304
    %v1306 = vrot.slane %v1305, 6
    %v1307 = vsel %vm358, %v1306, %v1305
    %v1309 = vadd.f32 %v1300, %v1307
    %v1310 = vstv %s255
    %v1311 = vmul.f32 %v1310, %v362
    %v1312 = vadd.f32 %v1309, %v1311
    %v1313 = vstv %s262
    %v1314 = vmul.f32 %v1313, %v362
    %1316 = vrot.lane.b32.xlu0 %v1314, 112
    %v1317 = vpop.permute.xlu0 %1316
    %v1318 = vrot.slane %v1317, 2
    %v1319 = vsel %vm307, %v1317, %v1318
    %v1321 = vadd.f32 %v1312, %v1319
    %v1322 = vstv %s269
    %v1323 = vmul.f32 %v1322, %v362
    %1325 = vrot.lane.b32.xlu0 %v1323, 96
    %v1326 = vpop.permute.xlu0 %1325
    %v1327 = vrot.slane %v1326, 2
    %v1328 = vsel %vm317, %v1326, %v1327
    %v1330 = vadd.f32 %v1321, %v1328
    %v1331 = vstv %s276
    %v1332 = vmul.f32 %v1331, %v393
    %1334 = vrot.lane.b32.xlu0 %v1332, 80
    %v1335 = vpop.permute.xlu0 %1334
    %v1336 = vrot.slane %v1335, 6
    %v1337 = vsel %vm327, %v1336, %v1335
    %v1339 = vadd.f32 %v1330, %v1337
    %v1340 = vstv %s283
    %v1341 = vmul.f32 %v1340, %v393
    %1343 = vrot.lane.b32.xlu0 %v1341, 64
    %v1344 = vpop.permute.xlu0 %1343
    %v1345 = vrot.slane %v1344, 6
    %v1346 = vsel %vm338, %v1345, %v1344
    %v1348 = vadd.f32 %v1339, %v1346
    %v1349 = vstv %s290
    %v1350 = vmul.f32 %v1349, %v393
    %1352 = vrot.lane.b32.xlu0 %v1350, 48
    %v1353 = vpop.permute.xlu0 %1352
    %v1354 = vrot.slane %v1353, 6
    %v1355 = vsel %vm348, %v1354, %v1353
    %v1357 = vadd.f32 %v1348, %v1355
    %v1358 = vstv %s297
    %v1359 = vmul.f32 %v1358, %v393
    %1361 = vrot.lane.b32.xlu0 %v1359, 32
    %v1362 = vpop.permute.xlu0 %1361
    %v1363 = vrot.slane %v1362, 6
    %v1364 = vsel %vm358, %v1363, %v1362
    %v1366 = vadd.f32 %v1357, %v1364
    %s1367 = scalar_lea.vmem [#allocation5], 6
    %v1368 = vld [vmem:[%s1367] ss:$8 sm:$0x3]
    %v1370 = vlaneseq
    %v1371 = vshrl.u32 %v1370, 7
    %v1372 = vsub.s32 0, %v1371
    %v1373 = vrot.slane %v1368, %v1372
    %v1374 = vlaneseq
    %v1375 = vshrl.u32 %v1374, 7
    %v1376 = vsub.s32 1, %v1375
    %v1377 = vrot.slane %v1368, %v1376
    %v1381 = vcombine.high %v1366, %v1366
    %v1383 = vunpack.c.l.s4 1983009808
    %v1384 = vunpack.c.0.s8 %v1383
    %v1385 = vlaneseq
    %v1386 = vshrl.u32 %v1385, 7
    %v1387 = vsub.s32 %v1384, %v1386
    %v1388 = vrot.slane %v1366, %v1387
    %v1390 = vunpack.c.l.s4 1983009808
    %v1391 = vunpack.c.0.s8 %v1390
    %v1392 = vlaneseq
    %v1393 = vshrl.u32 %v1392, 7
    %v1394 = vsub.s32 %v1391, %v1393
    %v1395 = vrot.slane %v1381, %v1394
    %v1396 = vcombine.high %v1388, %v1388
    %1397 = vrot.lane.b32.xlu0 %v1388, 45
    %v1398 = vpop.permute.xlu0 %1397
    %1399 = vrot.lane.b32.xlu0 %v1396, 45
    %v1400 = vpop.permute.xlu0 %1399
    %1401 = vrot.lane.b32.xlu0 %v1395, 45
    %v1402 = vpop.permute.xlu0 %1401
    %vm1403 = vcmask 367616
    %v1404 = vsel %vm1403, %v1398, %v1400
    %v1405 = vsel %vm1403, %v1400, %v1402
    %v1408 = vmul.f32 %v1373, %v1404
    %v1409 = vmul.f32 %v1377, %v1405
    %v1410 = vadd.f32 %v1252, %v1408
    %v1411 = vadd.f32 %v1253, %v1409
    %v1412 = vxor.u32 %v1410, 2147483648
    %v1413 = vxor.u32 %v1411, 2147483648
    %v1414 = vmul.f32 %v1412, 1.442695
    %v1415 = vpow.pop %v1414
    %v1416 = vmul.f32 %v1413, 1.442695
    %v1417 = vpow.pop %v1416
    %v1418 = vadd.f32 %v1415, 1.0
    %v1419 = vadd.f32 %v1417, 1.0
    %v1420 = vrcp.pop %v1418
    %v1421 = vmul.f32 1.0, %v1420
    %v1422 = vrcp.pop %v1419
    %v1423 = vmul.f32 1.0, %v1422
    %v1426 = vcombine.low %v1421, %v1423
    %v1428 = vunpack.c.l.s4 1983009808
    %v1429 = vunpack.c.0.s8 %v1428
    %v1430 = vlaneseq
    %v1431 = vshrl.u32 %v1430, 7
    %v1432 = vsub.s32 %v1429, %v1431
    %v1433 = vrot.slane %v1426, %v1432
    %1435 = vst [vmem:[#allocation10] sm:$0xf] %v1433
    // Predicated region
    $region18: #{tpu_custom_call.1} parent=1 // pred_check
      _
    $region19: #{tpu_custom_call.1} parent=1 // pred_check_branch
      %1437 = sbr.rel (0) target = $region21
    $region20: #{tpu_custom_call.1} parent=1 // pred_region
      %s1439 = ssub.s32 64, 64
      %1440 = vsyncadd [#allocation7], %s1439
      %s1442 = sshll.u32 [#allocation10], 4
      %s1443 = int_to_ptr.vmem [resolvable:$true] %s1442
      %1445 = dma.vmem_to_hbm [thread:$0]  %s1443, 64, %s3, [#allocation7]
    $region21: #{tpu_custom_call.1} parent=1 // pred_fallthru
      _
    // Predicated region
    $region22: #{tpu_custom_call.1} parent=1 // pred_check
      _
    $region23: #{tpu_custom_call.1} parent=1 // pred_check_branch
      %1447 = sbr.rel (0) target = $region25
    $region24: #{tpu_custom_call.1} parent=1 // pred_region
      %1448 = dma.done [#allocation7], 64
    $region25: #{tpu_custom_call.1} parent=1 // pred_fallthru
      _
    %1449 = vsyncpa [#allocation6], 1
    %1450 = vsyncpa [#allocation9], 1
    %1451 = vsyncpa [#allocation7], 1

</llo_original>
